<compile_context>
chip_gen: v7x
topology: tpu7x:2x2x1
jax: 0.10.0
libtpu: 0.0.40
codegen_flags: <defaults>
</compile_context>

<pallas_src>
import numpy as np
import jax
import jax.numpy as jnp
from jax.experimental import pallas as pl
from jax.experimental.pallas import tpu as pltpu

_EPS = 1e-5
_REF_PREC = jax.lax.Precision.HIGHEST     # reference only; kernel uses DEFAULT


# ----------------------------------------------------------------------------
# Kernel
# ----------------------------------------------------------------------------
def _make_mnist_kernel(TB):
    """TB = images per grid step (multiple of 8).  Activation rows = h*TB + b."""
    assert TB % 8 == 0 and TB >= 8

    def kernel(a0_ref, w1_ref, t1_ref, w2_ref, t2_ref, g1_ref, t3_ref,
               w4_ref, b4_ref, o_ref, lhs2_ref, lhs3_ref):
        f32 = jnp.float32

        def mm(a, b):
            # DEFAULT precision -> single-pass bf16 MXU, f32 accumulation.
            return jnp.dot(a, b, preferred_element_type=f32)

        # ---- conv1 + BN2d (folded): one wide-K matmul, K=140, N=256 ---------
        x = a0_ref[...].reshape(24 * TB, 140)            # rows = (parity, pooled-h, b)
        a1 = mm(x, w1_ref[...]) + t1_ref[...]            # (24*TB, 256) even|odd-w halves

        # ---- maxpool1 2x2 entirely on the VPU (no selection matmuls) --------
        pw = jnp.maximum(a1[:, 0:128], a1[:, 128:256])           # W-pairs: lane slices
        h1 = jnp.maximum(pw[0:12 * TB, :], pw[12 * TB:24 * TB, :])  # H-pairs: row blocks
        h1 = jnp.maximum(h1, 0.0)                        # ReLU; pad lanes [120,128) stay 0

        # ---- conv2 + BN2d: one K=640 matmul over a lane-concatenated LHS ----
        for ki in range(5):                              # aligned 128-lane block copies
            lhs2_ref[:, ki * 128:(ki + 1) * 128] = h1[ki * TB:(ki + 8) * TB, :]
        a2 = mm(lhs2_ref[...], w2_ref[...]) + t2_ref[...]          # (8*TB, 256)

        # ---- maxpool2 2x2 ----------------------------------------------------
        pw2 = jnp.maximum(a2[:, 0:128], a2[:, 128:256])
        pw2 = pw2.reshape(4, 2 * TB, 128)                # layout-preserving row split
        h2 = jnp.maximum(pw2[:, 0:TB, :], pw2[:, TB:2 * TB, :]).reshape(4 * TB, 128)
        h2 = jnp.maximum(h2, 0.0)

        # ---- flatten + fc1 + BN1d (folded) + ReLU: one K=512 matmul ---------
        for h in range(4):
            lhs3_ref[:, h * 128:(h + 1) * 128] = h2[h * TB:(h + 1) * TB, :]
        z1 = jnp.maximum(mm(lhs3_ref[...], g1_ref[...]) + t3_ref[...], 0.0)   # (TB, 50)

        # ---- fc2 + log_softmax ----------------------------------------------
        z2 = mm(z1, w4_ref[...]) + b4_ref[...]           # (TB, 10)
        mx = jnp.max(z2, axis=-1, keepdims=True)
        lse = mx + jnp.log(jnp.sum(jnp.exp(z2 - mx), axis=-1, keepdims=True))
        o_ref[...] = z2 - lse

    return kernel


# ----------------------------------------------------------------------------
# One-time parameter preparation (hoisted off the per-call hot path)
# ----------------------------------------------------------------------------
def prepare_params(p):
    f = lambda a: np.asarray(a, np.float32)

    # ---- conv1 + BN2d(10): one (140, 256) matrix.  Rows = ki*28 + w_in (5 row
    # taps lane-concatenated in the LHS); columns: even w_out -> [0,120),
    # odd w_out -> [128,248), pad lanes zero.
    w1, b1 = f(p['w_conv1']), f(p['b_conv1'])
    s1 = f(p['bn1_gamma']) / np.sqrt(f(p['bn1_var']) + _EPS)
    t1 = (b1 - f(p['bn1_mean'])) * s1 + f(p['bn1_beta'])
    C1 = 10
    W1 = np.zeros((140, 256), np.float32)
    T1 = np.zeros((1, 256), np.float32)
    for w_out in range(24):
        base = (w_out % 2) * 128 + (w_out // 2) * C1
        T1[0, base:base + C1] = t1
        for ki in range(5):
            for kj in range(5):
                W1[ki * 28 + w_out + kj, base:base + C1] = w1[:, 0, ki, kj] * s1

    # ---- conv2 + BN2d(20): one (640, 256) matrix.  Rows = ki*128 + w_in*10+ci
    # (5 taps of the pooled conv1 layout, 128 lanes each, junk rows zero);
    # columns: even w_out -> [0,80), odd w_out -> [128,208).
    w2, b2 = f(p['w_conv2']), f(p['b_conv2'])
    s2 = f(p['bn2_gamma']) / np.sqrt(f(p['bn2_var']) + _EPS)
    t2 = (b2 - f(p['bn2_mean'])) * s2 + f(p['bn2_beta'])
    CI, CO = 10, 20
    W2 = np.zeros((640, 256), np.float32)
    T2 = np.zeros((1, 256), np.float32)
    for w_out in range(8):
        base = (w_out % 2) * 128 + (w_out // 2) * CO
        T2[0, base:base + CO] = t2
        for ki in range(5):
            for kj in range(5):
                w_in = w_out + kj
                for ci in range(CI):
                    W2[ki * 128 + w_in * CI + ci, base:base + CO] = w2[:, ci, ki, kj] * s2

    # ---- fc1 + BN1d(50): one (512, 50) matrix over the lane-concatenated
    # pooled-h blocks; PyTorch view(-1,320) order is c*16 + h*4 + w.
    wf1, bf1 = f(p['w_fc1']), f(p['b_fc1'])
    s3 = f(p['bn3_gamma']) / np.sqrt(f(p['bn3_var']) + _EPS)
    t3 = (bf1 - f(p['bn3_mean'])) * s3 + f(p['bn3_beta'])
    G1 = np.zeros((512, 50), np.float32)
    for h in range(4):
        for w in range(4):
            for c in range(CO):
                G1[h * 128 + w * CO + c, :] = wf1[:, c * 16 + h * 4 + w] * s3
    T3 = t3[None, :]                                      # (1, 50)

    # ---- fc2 ----
    W4 = f(p['w_fc2']).T.copy()                           # (50, 10)
    B4 = f(p['b_fc2'])[None, :]                           # (1, 10)

    out = dict(w1=W1, t1=T1, w2=W2, t2=T2, g1=G1, t3=T3, w4=W4, b4=B4)
    return {k: jnp.asarray(v) for k, v in out.items()}


# ----------------------------------------------------------------------------
# Forward wrapper
# ----------------------------------------------------------------------------
def mnistnet_forward(x, kp, *, batch_tile=128):
    """x: (B, 1, 28, 28) float32.  kp: output of prepare_params()."""
    B = x.shape[0]
    tb = max(8, min(int(batch_tile), B))
    TB = -(-tb // 8) * 8                 # batch tile, multiple of 8
    Bp = -(-B // TB) * TB                # padded batch, multiple of TB
    nb = Bp // TB                        # grid size

    xs = jnp.asarray(x, jnp.float32).reshape(B, 28, 28)
    if Bp > B:
        xs = jnp.pad(xs, ((0, Bp - B), (0, 0), (0, 0)))

    # Lane-dense 5-row-tap LHS for conv1 (K=140), built once in the wrapper so
    # the kernel never touches a 28-lane buffer.  Rows ordered
    # (h-parity, pooled-h, batch) so both conv1 pooling steps are contiguous
    # VPU maxes in the kernel.  (For production, inputs could be pre-stored in
    # this layout to remove this XLA relayout entirely.)
    taps = jnp.concatenate([xs[:, ki:ki + 24, :] for ki in range(5)], axis=-1)  # (Bp,24,140)
    a0 = jnp.transpose(taps, (1, 0, 2))                                         # (24,Bp,140)
    a0 = a0.reshape(12, 2, Bp, 140).transpose(1, 0, 2, 3).reshape(24, Bp, 140)

    args = (a0, kp['w1'], kp['t1'], kp['w2'], kp['t2'],
            kp['g1'], kp['t3'], kp['w4'], kp['b4'])

    in_specs = [
        pl.BlockSpec((24, TB, 140), lambda i: (0, i, 0)),   # batch-tiled input
        pl.BlockSpec((140, 256), lambda i: (0, 0)),         # weights: VMEM-resident
        pl.BlockSpec((1, 256), lambda i: (0, 0)),
        pl.BlockSpec((640, 256), lambda i: (0, 0)),
        pl.BlockSpec((1, 256), lambda i: (0, 0)),
        pl.BlockSpec((512, 50), lambda i: (0, 0)),
        pl.BlockSpec((1, 50), lambda i: (0, 0)),
        pl.BlockSpec((50, 10), lambda i: (0, 0)),
        pl.BlockSpec((1, 10), lambda i: (0, 0)),
    ]
    out_specs = pl.BlockSpec((TB, 10), lambda i: (i, 0))

    flops = 2 * Bp * (24 * 140 * 256 + 8 * 640 * 256 + 512 * 50 + 50 * 10)
    w_bytes = sum(int(np.prod(kp[k].shape)) * 4
                  for k in ('w1', 't1', 'w2', 't2', 'g1', 't3', 'w4', 'b4'))
    bytes_acc = 24 * Bp * 140 * 4 + w_bytes + Bp * 10 * 4

    out = pl.pallas_call(
        _make_mnist_kernel(TB),
        out_shape=jax.ShapeDtypeStruct((Bp, 10), jnp.float32),
        grid=(nb,),
        in_specs=in_specs,
        out_specs=out_specs,
        scratch_shapes=[pltpu.VMEM((8 * TB, 640), jnp.float32),   # conv2 wide-K LHS
                        pltpu.VMEM((TB, 512), jnp.float32)],      # fc1 wide-K LHS
        compiler_params=pltpu.CompilerParams(
            dimension_semantics=("parallel",),
            vmem_limit_bytes=32 * 1024 * 1024),
        cost_estimate=pl.CostEstimate(flops=int(flops),
                                      transcendentals=int(11 * Bp),
                                      bytes_accessed=int(bytes_acc)),
    )(*args)

    return out[:B]


# ----------------------------------------------------------------------------
# Deterministic parameter init (PyTorch-shaped tensors) and pure-JAX reference
# ----------------------------------------------------------------------------
def init_params(key):
    ks = jax.random.split(key, 20)

    def xavier(k, shape):
        if len(shape) == 4:
            fan_in = shape[1] * shape[2] * shape[3]
            fan_out = shape[0] * shape[2] * shape[3]
        else:
            fan_in, fan_out = shape[1], shape[0]
        std = float(np.sqrt(2.0 / (fan_in + fan_out)))
        return std * jax.random.normal(k, shape, jnp.float32)

    def bn(k0, k1, k2, k3, n):
        return (1.0 + 0.1 * jax.random.normal(k0, (n,), jnp.float32),
                0.1 * jax.random.normal(k1, (n,), jnp.float32),
                0.1 * jax.random.normal(k2, (n,), jnp.float32),
                0.5 + jax.random.uniform(k3, (n,), jnp.float32))

    p = {}
    p['w_conv1'] = xavier(ks[0], (10, 1, 5, 5))
    p['b_conv1'] = 0.1 * jax.random.normal(ks[1], (10,), jnp.float32)
    p['bn1_gamma'], p['bn1_beta'], p['bn1_mean'], p['bn1_var'] = bn(ks[2], ks[3], ks[4], ks[5], 10)
    p['w_conv2'] = xavier(ks[6], (20, 10, 5, 5))
    p['b_conv2'] = 0.1 * jax.random.normal(ks[7], (20,), jnp.float32)
    p['bn2_gamma'], p['bn2_beta'], p['bn2_mean'], p['bn2_var'] = bn(ks[8], ks[9], ks[10], ks[11], 20)
    p['w_fc1'] = xavier(ks[12], (50, 320))
    p['b_fc1'] = 0.1 * jax.random.normal(ks[13], (50,), jnp.float32)
    p['bn3_gamma'], p['bn3_beta'], p['bn3_mean'], p['bn3_var'] = bn(ks[14], ks[15], ks[16], ks[17], 50)
    p['w_fc2'] = xavier(ks[18], (10, 50))
    p['b_fc2'] = 0.1 * jax.random.normal(ks[19], (10,), jnp.float32)
    return p


def reference_forward(x, p):
    """Pure-JAX replica of MNISTNet.forward (eval-mode BatchNorm), f32 HIGHEST."""
    def bn2d(z, g, b, m, v):
        shp = (1, -1, 1, 1)
        return (z - m.reshape(shp)) * (g.reshape(shp) / jnp.sqrt(v.reshape(shp) + _EPS)) + b.reshape(shp)

    z = jax.lax.conv_general_dilated(x, p['w_conv1'], (1, 1), 'VALID',
                                     dimension_numbers=('NCHW', 'OIHW', 'NCHW'),
                                     precision=_REF_PREC)
    z = z + p['b_conv1'].reshape(1, -1, 1, 1)
    z = bn2d(z, p['bn1_gamma'], p['bn1_beta'], p['bn1_mean'], p['bn1_var'])
    z = jax.lax.reduce_window(z, -jnp.inf, jax.lax.max, (1, 1, 2, 2), (1, 1, 2, 2), 'VALID')
    z = jnp.maximum(z, 0.0)

    z = jax.lax.conv_general_dilated(z, p['w_conv2'], (1, 1), 'VALID',
                                     dimension_numbers=('NCHW', 'OIHW', 'NCHW'),
                                     precision=_REF_PREC)
    z = z + p['b_conv2'].reshape(1, -1, 1, 1)
    z = bn2d(z, p['bn2_gamma'], p['bn2_beta'], p['bn2_mean'], p['bn2_var'])
    z = jax.lax.reduce_window(z, -jnp.inf, jax.lax.max, (1, 1, 2, 2), (1, 1, 2, 2), 'VALID')
    z = jnp.maximum(z, 0.0)

    z = z.reshape(z.shape[0], -1)                         # view(-1, 320)
    z = jnp.dot(z, p['w_fc1'].T, precision=_REF_PREC) + p['b_fc1']
    z = (z - p['bn3_mean']) * (p['bn3_gamma'] / jnp.sqrt(p['bn3_var'] + _EPS)) + p['bn3_beta']
    z = jnp.maximum(z, 0.0)
    z = jnp.dot(z, p['w_fc2'].T, precision=_REF_PREC) + p['b_fc2']
    return jax.nn.log_softmax(z, axis=1)


if __name__ == "__main__":
    key = jax.random.PRNGKey(0)
    kx, kparams_key = jax.random.split(key)

    params = init_params(kparams_key)
    kparams = prepare_params(params)      # one-time weight prep (off hot path)

    # Tolerances are deliberately relaxed vs the f32/HIGHEST reference because
    # the kernel's matmuls use single-pass bf16 MXU inputs (DEFAULT precision)
    # with f32 accumulation, per the performance review.
    TOL = dict(rtol=5e-2, atol=5e-2)

    # Small demo batch (B=2) -> single grid step.
    x = jax.random.normal(kx, (2, 1, 28, 28), jnp.float32)
    y = jax.block_until_ready(mnistnet_forward(x, kparams))
    np.testing.assert_allclose(np.asarray(y), np.asarray(reference_forward(x, params)), **TOL)
    assert y.shape == (2, 10)

    # Non-multiple batch with a small tile -> exercises the parallel batch grid (3 steps).
    x2 = jax.random.normal(jax.random.PRNGKey(1), (37, 1, 28, 28), jnp.float32)
    y2 = jax.block_until_ready(mnistnet_forward(x2, kparams, batch_tile=16))
    np.testing.assert_allclose(np.asarray(y2), np.asarray(reference_forward(x2, params)), **TOL)
    assert y2.shape == (37, 10)

    print("KERNEL_OK")
</pallas_src>

<mosaic_0001>
module attributes {stable_mosaic.version = 11 : i64} {
  func.func @kernel(%arg0: i32, %arg1: memref<24x8x140xf32, #tpu.memory_space<vmem>>, %arg2: memref<140x256xf32, #tpu.memory_space<vmem>>, %arg3: memref<1x256xf32, #tpu.memory_space<vmem>>, %arg4: memref<640x256xf32, #tpu.memory_space<vmem>>, %arg5: memref<1x256xf32, #tpu.memory_space<vmem>>, %arg6: memref<512x50xf32, #tpu.memory_space<vmem>>, %arg7: memref<1x50xf32, #tpu.memory_space<vmem>>, %arg8: memref<50x10xf32, #tpu.memory_space<vmem>>, %arg9: memref<1x10xf32, #tpu.memory_space<vmem>>, %arg10: memref<8x10xf32, #tpu.memory_space<vmem>>, %arg11: memref<64x640xf32, #tpu.memory_space<vmem>>, %arg12: memref<8x512xf32, #tpu.memory_space<vmem>>) attributes {dimension_semantics = [#tpu.dimension_semantics<parallel>], iteration_bounds = array<i64: 1>, scalar_prefetch = 0 : i64, scratch_operands = 2 : i64, tpu.core_type = #tpu.core_type<tc>, window_params = [{transform_indices = @transform_0, window_bounds = array<i64: 24, 8, 140>}, {pipeline_mode = #tpu.pipeline_mode<synchronous>, transform_indices = @transform_1, window_bounds = array<i64: 140, 256>}, {pipeline_mode = #tpu.pipeline_mode<synchronous>, transform_indices = @transform_2, window_bounds = array<i64: 1, 256>}, {pipeline_mode = #tpu.pipeline_mode<synchronous>, transform_indices = @transform_3, window_bounds = array<i64: 640, 256>}, {pipeline_mode = #tpu.pipeline_mode<synchronous>, transform_indices = @transform_4, window_bounds = array<i64: 1, 256>}, {pipeline_mode = #tpu.pipeline_mode<synchronous>, transform_indices = @transform_5, window_bounds = array<i64: 512, 50>}, {pipeline_mode = #tpu.pipeline_mode<synchronous>, transform_indices = @transform_6, window_bounds = array<i64: 1, 50>}, {pipeline_mode = #tpu.pipeline_mode<synchronous>, transform_indices = @transform_7, window_bounds = array<i64: 50, 10>}, {pipeline_mode = #tpu.pipeline_mode<synchronous>, transform_indices = @transform_8, window_bounds = array<i64: 1, 10>}, {transform_indices = @transform_9, window_bounds = array<i64: 8, 10>}]} {
    %c0 = arith.constant 0 : index
    %c0_0 = arith.constant 0 : index
    %c0_1 = arith.constant 0 : index
    %0 = vector.load %arg1[%c0, %c0_0, %c0_1] : memref<24x8x140xf32, #tpu.memory_space<vmem>>, vector<24x8x140xf32>
    %1 = vector.shape_cast %0 : vector<24x8x140xf32> to vector<192x140xf32>
    %c0_2 = arith.constant 0 : index
    %c0_3 = arith.constant 0 : index
    %2 = vector.load %arg2[%c0_2, %c0_3] : memref<140x256xf32, #tpu.memory_space<vmem>>, vector<140x256xf32>
    %cst = arith.constant dense<0.000000e+00> : vector<192x256xf32>
    %3 = tpu.matmul %1, %2, %cst {dimension_numbers = #tpu.dot_dimension_numbers<[1], [0], [0], [1], [0, 0, 1, 1], [], []>} : vector<192x140xf32>, vector<140x256xf32>, vector<192x256xf32> -> vector<192x256xf32>
    %c0_4 = arith.constant 0 : index
    %c0_5 = arith.constant 0 : index
    %4 = vector.load %arg3[%c0_4, %c0_5] : memref<1x256xf32, #tpu.memory_space<vmem>>, vector<1x256xf32>
    %5 = vector.broadcast %4 : vector<1x256xf32> to vector<192x256xf32>
    %6 = arith.addf %3, %5 : vector<192x256xf32>
    %7 = vector.extract_strided_slice %6 {offsets = [0, 0], sizes = [192, 128], strides = [1, 1]} : vector<192x256xf32> to vector<192x128xf32>
    %8 = vector.extract_strided_slice %6 {offsets = [0, 128], sizes = [192, 128], strides = [1, 1]} : vector<192x256xf32> to vector<192x128xf32>
    %9 = arith.maximumf %7, %8 : vector<192x128xf32>
    %10 = vector.extract_strided_slice %9 {offsets = [0, 0], sizes = [96, 128], strides = [1, 1]} : vector<192x128xf32> to vector<96x128xf32>
    %11 = vector.extract_strided_slice %9 {offsets = [96, 0], sizes = [96, 128], strides = [1, 1]} : vector<192x128xf32> to vector<96x128xf32>
    %12 = arith.maximumf %10, %11 : vector<96x128xf32>
    %cst_6 = arith.constant 0.000000e+00 : f32
    %13 = vector.broadcast %cst_6 : f32 to vector<96x128xf32>
    %14 = arith.maximumf %12, %13 : vector<96x128xf32>
    %15 = vector.extract_strided_slice %14 {offsets = [0, 0], sizes = [64, 128], strides = [1, 1]} : vector<96x128xf32> to vector<64x128xf32>
    %c0_7 = arith.constant 0 : index
    %c0_8 = arith.constant 0 : index
    %16 = vector.load %arg11[%c0_7, %c0_8] : memref<64x640xf32, #tpu.memory_space<vmem>>, vector<64x128xf32>
    tpu.vector_store %arg11[%c0_7, %c0_8], %15 {strides = array<i32>} : memref<64x640xf32, #tpu.memory_space<vmem>>, vector<64x128xf32>,
    %17 = vector.extract_strided_slice %14 {offsets = [8, 0], sizes = [64, 128], strides = [1, 1]} : vector<96x128xf32> to vector<64x128xf32>
    %c0_9 = arith.constant 0 : index
    %c128 = arith.constant 128 : index
    %18 = vector.load %arg11[%c0_9, %c128] : memref<64x640xf32, #tpu.memory_space<vmem>>, vector<64x128xf32>
    tpu.vector_store %arg11[%c0_9, %c128], %17 {strides = array<i32>} : memref<64x640xf32, #tpu.memory_space<vmem>>, vector<64x128xf32>,
    %19 = vector.extract_strided_slice %14 {offsets = [16, 0], sizes = [64, 128], strides = [1, 1]} : vector<96x128xf32> to vector<64x128xf32>
    %c0_10 = arith.constant 0 : index
    %c256 = arith.constant 256 : index
    %20 = vector.load %arg11[%c0_10, %c256] : memref<64x640xf32, #tpu.memory_space<vmem>>, vector<64x128xf32>
    tpu.vector_store %arg11[%c0_10, %c256], %19 {strides = array<i32>} : memref<64x640xf32, #tpu.memory_space<vmem>>, vector<64x128xf32>,
    %21 = vector.extract_strided_slice %14 {offsets = [24, 0], sizes = [64, 128], strides = [1, 1]} : vector<96x128xf32> to vector<64x128xf32>
    %c0_11 = arith.constant 0 : index
    %c384 = arith.constant 384 : index
    %22 = vector.load %arg11[%c0_11, %c384] : memref<64x640xf32, #tpu.memory_space<vmem>>, vector<64x128xf32>
    tpu.vector_store %arg11[%c0_11, %c384], %21 {strides = array<i32>} : memref<64x640xf32, #tpu.memory_space<vmem>>, vector<64x128xf32>,
    %23 = vector.extract_strided_slice %14 {offsets = [32, 0], sizes = [64, 128], strides = [1, 1]} : vector<96x128xf32> to vector<64x128xf32>
    %c0_12 = arith.constant 0 : index
    %c512 = arith.constant 512 : index
    %24 = vector.load %arg11[%c0_12, %c512] : memref<64x640xf32, #tpu.memory_space<vmem>>, vector<64x128xf32>
    tpu.vector_store %arg11[%c0_12, %c512], %23 {strides = array<i32>} : memref<64x640xf32, #tpu.memory_space<vmem>>, vector<64x128xf32>,
    %c0_13 = arith.constant 0 : index
    %c0_14 = arith.constant 0 : index
    %25 = vector.load %arg11[%c0_13, %c0_14] : memref<64x640xf32, #tpu.memory_space<vmem>>, vector<64x640xf32>
    %c0_15 = arith.constant 0 : index
    %c0_16 = arith.constant 0 : index
    %26 = vector.load %arg4[%c0_15, %c0_16] : memref<640x256xf32, #tpu.memory_space<vmem>>, vector<640x256xf32>
    %cst_17 = arith.constant dense<0.000000e+00> : vector<64x256xf32>
    %27 = tpu.matmul %25, %26, %cst_17 {dimension_numbers = #tpu.dot_dimension_numbers<[1], [0], [0], [1], [0, 0, 1, 1], [], []>} : vector<64x640xf32>, vector<640x256xf32>, vector<64x256xf32> -> vector<64x256xf32>
    %c0_18 = arith.constant 0 : index
    %c0_19 = arith.constant 0 : index
    %28 = vector.load %arg5[%c0_18, %c0_19] : memref<1x256xf32, #tpu.memory_space<vmem>>, vector<1x256xf32>
    %29 = vector.broadcast %28 : vector<1x256xf32> to vector<64x256xf32>
    %30 = arith.addf %27, %29 : vector<64x256xf32>
    %31 = vector.extract_strided_slice %30 {offsets = [0, 0], sizes = [64, 128], strides = [1, 1]} : vector<64x256xf32> to vector<64x128xf32>
    %32 = vector.extract_strided_slice %30 {offsets = [0, 128], sizes = [64, 128], strides = [1, 1]} : vector<64x256xf32> to vector<64x128xf32>
    %33 = arith.maximumf %31, %32 : vector<64x128xf32>
    %34 = vector.shape_cast %33 : vector<64x128xf32> to vector<4x16x128xf32>
    %35 = vector.extract_strided_slice %34 {offsets = [0, 0, 0], sizes = [4, 8, 128], strides = [1, 1, 1]} : vector<4x16x128xf32> to vector<4x8x128xf32>
    %36 = vector.extract_strided_slice %34 {offsets = [0, 8, 0], sizes = [4, 8, 128], strides = [1, 1, 1]} : vector<4x16x128xf32> to vector<4x8x128xf32>
    %37 = arith.maximumf %35, %36 : vector<4x8x128xf32>
    %38 = vector.shape_cast %37 : vector<4x8x128xf32> to vector<32x128xf32>
    %cst_20 = arith.constant 0.000000e+00 : f32
    %39 = vector.broadcast %cst_20 : f32 to vector<32x128xf32>
    %40 = arith.maximumf %38, %39 : vector<32x128xf32>
    %41 = vector.extract_strided_slice %40 {offsets = [0, 0], sizes = [8, 128], strides = [1, 1]} : vector<32x128xf32> to vector<8x128xf32>
    %c0_21 = arith.constant 0 : index
    %c0_22 = arith.constant 0 : index
    %42 = vector.load %arg12[%c0_21, %c0_22] : memref<8x512xf32, #tpu.memory_space<vmem>>, vector<8x128xf32>
    tpu.vector_store %arg12[%c0_21, %c0_22], %41 {strides = array<i32>} : memref<8x512xf32, #tpu.memory_space<vmem>>, vector<8x128xf32>,
    %43 = vector.extract_strided_slice %40 {offsets = [8, 0], sizes = [8, 128], strides = [1, 1]} : vector<32x128xf32> to vector<8x128xf32>
    %c0_23 = arith.constant 0 : index
    %c128_24 = arith.constant 128 : index
    %44 = vector.load %arg12[%c0_23, %c128_24] : memref<8x512xf32, #tpu.memory_space<vmem>>, vector<8x128xf32>
    tpu.vector_store %arg12[%c0_23, %c128_24], %43 {strides = array<i32>} : memref<8x512xf32, #tpu.memory_space<vmem>>, vector<8x128xf32>,
    %45 = vector.extract_strided_slice %40 {offsets = [16, 0], sizes = [8, 128], strides = [1, 1]} : vector<32x128xf32> to vector<8x128xf32>
    %c0_25 = arith.constant 0 : index
    %c256_26 = arith.constant 256 : index
    %46 = vector.load %arg12[%c0_25, %c256_26] : memref<8x512xf32, #tpu.memory_space<vmem>>, vector<8x128xf32>
    tpu.vector_store %arg12[%c0_25, %c256_26], %45 {strides = array<i32>} : memref<8x512xf32, #tpu.memory_space<vmem>>, vector<8x128xf32>,
    %47 = vector.extract_strided_slice %40 {offsets = [24, 0], sizes = [8, 128], strides = [1, 1]} : vector<32x128xf32> to vector<8x128xf32>
    %c0_27 = arith.constant 0 : index
    %c384_28 = arith.constant 384 : index
    %48 = vector.load %arg12[%c0_27, %c384_28] : memref<8x512xf32, #tpu.memory_space<vmem>>, vector<8x128xf32>
    tpu.vector_store %arg12[%c0_27, %c384_28], %47 {strides = array<i32>} : memref<8x512xf32, #tpu.memory_space<vmem>>, vector<8x128xf32>,
    %c0_29 = arith.constant 0 : index
    %c0_30 = arith.constant 0 : index
    %49 = vector.load %arg12[%c0_29, %c0_30] : memref<8x512xf32, #tpu.memory_space<vmem>>, vector<8x512xf32>
    %c0_31 = arith.constant 0 : index
    %c0_32 = arith.constant 0 : index
    %50 = vector.load %arg6[%c0_31, %c0_32] : memref<512x50xf32, #tpu.memory_space<vmem>>, vector<512x50xf32>
    %cst_33 = arith.constant dense<0.000000e+00> : vector<8x50xf32>
    %51 = tpu.matmul %49, %50, %cst_33 {dimension_numbers = #tpu.dot_dimension_numbers<[1], [0], [0], [1], [0, 0, 1, 1], [], []>} : vector<8x512xf32>, vector<512x50xf32>, vector<8x50xf32> -> vector<8x50xf32>
    %c0_34 = arith.constant 0 : index
    %c0_35 = arith.constant 0 : index
    %52 = vector.load %arg7[%c0_34, %c0_35] : memref<1x50xf32, #tpu.memory_space<vmem>>, vector<1x50xf32>
    %53 = vector.broadcast %52 : vector<1x50xf32> to vector<8x50xf32>
    %54 = arith.addf %51, %53 : vector<8x50xf32>
    %cst_36 = arith.constant 0.000000e+00 : f32
    %55 = vector.broadcast %cst_36 : f32 to vector<8x50xf32>
    %56 = arith.maximumf %54, %55 : vector<8x50xf32>
    %c0_37 = arith.constant 0 : index
    %c0_38 = arith.constant 0 : index
    %57 = vector.load %arg8[%c0_37, %c0_38] : memref<50x10xf32, #tpu.memory_space<vmem>>, vector<50x10xf32>
    %cst_39 = arith.constant dense<0.000000e+00> : vector<8x10xf32>
    %58 = tpu.matmul %56, %57, %cst_39 {dimension_numbers = #tpu.dot_dimension_numbers<[1], [0], [0], [1], [0, 0, 1, 1], [], []>} : vector<8x50xf32>, vector<50x10xf32>, vector<8x10xf32> -> vector<8x10xf32>
    %c0_40 = arith.constant 0 : index
    %c0_41 = arith.constant 0 : index
    %59 = vector.load %arg9[%c0_40, %c0_41] : memref<1x10xf32, #tpu.memory_space<vmem>>, vector<1x10xf32>
    %60 = vector.broadcast %59 : vector<1x10xf32> to vector<8x10xf32>
    %61 = arith.addf %58, %60 : vector<8x10xf32>
    %cst_42 = arith.constant dense<0xFF800000> : vector<8xf32>
    %62 = vector.multi_reduction <maximumf>, %61, %cst_42 [1] : vector<8x10xf32> to vector<8xf32>
    %63 = vector.shape_cast %62 : vector<8xf32> to vector<8x1xf32>
    %64 = vector.broadcast %63 : vector<8x1xf32> to vector<8x10xf32>
    %65 = arith.subf %61, %64 : vector<8x10xf32>
    %66 = math.exp %65 : vector<8x10xf32>
    %cst_43 = arith.constant dense<0.000000e+00> : vector<8xf32>
    %67 = vector.multi_reduction <add>, %66, %cst_43 [1] : vector<8x10xf32> to vector<8xf32>
    %68 = vector.shape_cast %67 : vector<8xf32> to vector<8x1xf32>
    %69 = math.log %68 : vector<8x1xf32>
    %70 = arith.addf %63, %69 : vector<8x1xf32>
    %71 = vector.broadcast %70 : vector<8x1xf32> to vector<8x10xf32>
    %72 = arith.subf %61, %71 : vector<8x10xf32>
    %c0_44 = arith.constant 0 : index
    %c0_45 = arith.constant 0 : index
    %73 = vector.load %arg10[%c0_44, %c0_45] : memref<8x10xf32, #tpu.memory_space<vmem>>, vector<8x10xf32>
    tpu.vector_store %arg10[%c0_44, %c0_45], %72 {strides = array<i32>} : memref<8x10xf32, #tpu.memory_space<vmem>>, vector<8x10xf32>,
    return
  }
  func.func @transform_0(%arg0: i32) -> (i32, i32, i32) {
    %c0_i32 = arith.constant 0 : i32
    %c0_i32_0 = arith.constant 0 : i32
    %c0_i32_1 = arith.constant 0 : i32
    return %c0_i32, %arg0, %c0_i32_0 : i32, i32, i32
  }
  func.func @transform_1(%arg0: i32) -> (i32, i32) {
    %c0_i32 = arith.constant 0 : i32
    %c0_i32_0 = arith.constant 0 : i32
    %c0_i32_1 = arith.constant 0 : i32
    return %c0_i32, %c0_i32_0 : i32, i32
  }
  func.func @transform_2(%arg0: i32) -> (i32, i32) {
    %c0_i32 = arith.constant 0 : i32
    %c0_i32_0 = arith.constant 0 : i32
    %c0_i32_1 = arith.constant 0 : i32
    return %c0_i32, %c0_i32_0 : i32, i32
  }
  func.func @transform_3(%arg0: i32) -> (i32, i32) {
    %c0_i32 = arith.constant 0 : i32
    %c0_i32_0 = arith.constant 0 : i32
    %c0_i32_1 = arith.constant 0 : i32
    return %c0_i32, %c0_i32_0 : i32, i32
  }
  func.func @transform_4(%arg0: i32) -> (i32, i32) {
    %c0_i32 = arith.constant 0 : i32
    %c0_i32_0 = arith.constant 0 : i32
    %c0_i32_1 = arith.constant 0 : i32
    return %c0_i32, %c0_i32_0 : i32, i32
  }
  func.func @transform_5(%arg0: i32) -> (i32, i32) {
    %c0_i32 = arith.constant 0 : i32
    %c0_i32_0 = arith.constant 0 : i32
    %c0_i32_1 = arith.constant 0 : i32
    return %c0_i32, %c0_i32_0 : i32, i32
  }
  func.func @transform_6(%arg0: i32) -> (i32, i32) {
    %c0_i32 = arith.constant 0 : i32
    %c0_i32_0 = arith.constant 0 : i32
    %c0_i32_1 = arith.constant 0 : i32
    return %c0_i32, %c0_i32_0 : i32, i32
  }
  func.func @transform_7(%arg0: i32) -> (i32, i32) {
    %c0_i32 = arith.constant 0 : i32
    %c0_i32_0 = arith.constant 0 : i32
    %c0_i32_1 = arith.constant 0 : i32
    return %c0_i32, %c0_i32_0 : i32, i32
  }
  func.func @transform_8(%arg0: i32) -> (i32, i32) {
    %c0_i32 = arith.constant 0 : i32
    %c0_i32_0 = arith.constant 0 : i32
    %c0_i32_1 = arith.constant 0 : i32
    return %c0_i32, %c0_i32_0 : i32, i32
  }
  func.func @transform_9(%arg0: i32) -> (i32, i32) {
    %c0_i32 = arith.constant 0 : i32
    %c0_i32_0 = arith.constant 0 : i32
    return %arg0, %c0_i32 : i32, i32
  }
}

</mosaic_0001>

<llo_original>
// kernel: tpu_custom_call.1
$region0: #{tpu_custom_call.1}
  #allocation0 [shape = 'u32[]', space=smem, size = 0x4, offset = 0x4, fixed_abs, tag = 'smem constant byte address 0x4 - core index']
  #allocation1 [shape = 'u32[144,128]{1,0:T(1,128)}', space=vmem, size = 0x12000, scoped, tag = 'internal scratch']
  #allocation2 [shape = 'f32[64,640]{1,0:T(8,128)}', space=vmem, size = 0x28000, scoped, tag = 'scratch operand']
  #allocation3 [shape = 'f32[8,512]{1,0:T(8,128)}', space=vmem, size = 0x4000, scoped, tag = 'scratch operand']
  %s0 = inlined_call_operand.vmem [shape: f32[24,8,140], index: 0, kind: input, shape index: {}]
  %s1 = inlined_call_operand.vmem [shape: f32[140,256], index: 1, kind: input, shape index: {}]
  %s2 = inlined_call_operand.vmem [shape: f32[1,256], index: 2, kind: input, shape index: {}]
  %s3 = inlined_call_operand.hbm [shape: f32[640,256], index: 3, kind: input, shape index: {}]
  %s4 = inlined_call_operand.vmem [shape: f32[1,256], index: 4, kind: input, shape index: {}]
  %s5 = inlined_call_operand.vmem [shape: f32[512,50], index: 5, kind: input, shape index: {}]
  %s6 = inlined_call_operand.vmem [shape: f32[1,50], index: 6, kind: input, shape index: {}]
  %s7 = inlined_call_operand.vmem [shape: f32[50,10], index: 7, kind: input, shape index: {}]
  %s8 = inlined_call_operand.vmem [shape: f32[1,10], index: 8, kind: input, shape index: {}]
  %s9 = inlined_call_operand.hbm [shape: f32[8,10], index: 9, kind: output, shape index: {}]
  %s10 = sld [smem:[#allocation0]]
  $region50: #{tpu_custom_call.1} parent=0
    _
  %s12 = ssub.s32 1, %s10
  %s13 = scalar_select 0, %s12, %s10
  $region1: #{tpu_custom_call.1} parent=0
    #allocation4 [shape = 'u8[655360]{0}', space=vmem, size = 0xa0000, scoped, tag = 'input window, operand 3, single buffered']
    #allocation5 [shape = 's32[1]{0}', space=sflag, size = 0x4, scoped, tag = 'scoped memory for tpu_custom_call.1']
    #allocation6 [shape = 's32[1]{0}', space=sflag, size = 0x4, scoped, tag = 'scoped memory for tpu_custom_call.1']
    #allocation7 [shape = 'u8[4096]{0}', space=vmem, size = 0x1000, scoped, tag = 'output window, operand 0, single buffered']
    %14 = vsyncpa [#allocation5], 0
    %15 = vsyncpa [#allocation6], 0
    // Predicated region
    $region2: #{tpu_custom_call.1} parent=1 // pred_check
      _
    $region3: #{tpu_custom_call.1} parent=1 // pred_check_branch
      %17 = sbr.rel (0) target = $region5
    $region4: #{tpu_custom_call.1} parent=1 // pred_region
      _
    $region5: #{tpu_custom_call.1} parent=1 // pred_fallthru
      _
    // Predicated region
    $region6: #{tpu_custom_call.1} parent=1 // pred_check
      _
    $region7: #{tpu_custom_call.1} parent=1 // pred_check_branch
      %19 = sbr.rel (0) target = $region9
    $region8: #{tpu_custom_call.1} parent=1 // pred_region
      _
    $region9: #{tpu_custom_call.1} parent=1 // pred_fallthru
      _
    // Predicated region
    $region10: #{tpu_custom_call.1} parent=1 // pred_check
      _
    $region11: #{tpu_custom_call.1} parent=1 // pred_check_branch
      %21 = sbr.rel (0) target = $region13
    $region12: #{tpu_custom_call.1} parent=1 // pred_region
      _
    $region13: #{tpu_custom_call.1} parent=1 // pred_fallthru
      _
    // Predicated region
    $region14: #{tpu_custom_call.1} parent=1 // pred_check
      _
    $region15: #{tpu_custom_call.1} parent=1 // pred_check_branch
      %23 = sbr.rel (0) target = $region17
    $region16: #{tpu_custom_call.1} parent=1 // pred_region
      %s25 = ssub.s32 20480, 20480
      %26 = vsyncadd [#allocation5], %s25
      %s27 = sshll.u32 [#allocation4], 4
      %s28 = int_to_ptr.vmem [resolvable:$true] %s27
      %33 = dma.hbm_to_vmem [thread:$0]  %s3, 20480, %s28, [#allocation5], 256, 256, 16
    $region17: #{tpu_custom_call.1} parent=1 // pred_fallthru
      _
    // Predicated region
    $region18: #{tpu_custom_call.1} parent=1 // pred_check
      _
    $region19: #{tpu_custom_call.1} parent=1 // pred_check_branch
      %35 = sbr.rel (0) target = $region21
    $region20: #{tpu_custom_call.1} parent=1 // pred_region
      _
    $region21: #{tpu_custom_call.1} parent=1 // pred_fallthru
      _
    // Predicated region
    $region22: #{tpu_custom_call.1} parent=1 // pred_check
      _
    $region23: #{tpu_custom_call.1} parent=1 // pred_check_branch
      %37 = sbr.rel (0) target = $region25
    $region24: #{tpu_custom_call.1} parent=1 // pred_region
      _
    $region25: #{tpu_custom_call.1} parent=1 // pred_fallthru
      _
    // Predicated region
    $region26: #{tpu_custom_call.1} parent=1 // pred_check
      _
    $region27: #{tpu_custom_call.1} parent=1 // pred_check_branch
      %39 = sbr.rel (0) target = $region29
    $region28: #{tpu_custom_call.1} parent=1 // pred_region
      _
    $region29: #{tpu_custom_call.1} parent=1 // pred_fallthru
      _
    // Predicated region
    $region30: #{tpu_custom_call.1} parent=1 // pred_check
      _
    $region31: #{tpu_custom_call.1} parent=1 // pred_check_branch
      %41 = sbr.rel (0) target = $region33
    $region32: #{tpu_custom_call.1} parent=1 // pred_region
      _
    $region33: #{tpu_custom_call.1} parent=1 // pred_fallthru
      _
    // Predicated region
    $region34: #{tpu_custom_call.1} parent=1 // pred_check
      _
    $region35: #{tpu_custom_call.1} parent=1 // pred_check_branch
      %43 = sbr.rel (0) target = $region37
    $region36: #{tpu_custom_call.1} parent=1 // pred_region
      _
    $region37: #{tpu_custom_call.1} parent=1 // pred_fallthru
      _
    // Predicated region
    $region38: #{tpu_custom_call.1} parent=1 // pred_check
      _
    $region39: #{tpu_custom_call.1} parent=1 // pred_check_branch
      %45 = sbr.rel (0) target = $region41
    $region40: #{tpu_custom_call.1} parent=1 // pred_region
      %46 = dma.done [#allocation5], 20480
    $region41: #{tpu_custom_call.1} parent=1 // pred_fallthru
      _
    %v47 = vld [vmem:[%s0] sm:$0xff]
    %v48 = vld [vmem:[%s0 + $0x8] sm:$0xff]
    %v49 = vld [vmem:[%s0 + $0x10] sm:$0xff]
    %v50 = vld [vmem:[%s0 + $0x18] sm:$0xff]
    %v51 = vld [vmem:[%s0 + $0x20] sm:$0xff]
    %v52 = vld [vmem:[%s0 + $0x28] sm:$0xff]
    %v53 = vld [vmem:[%s0 + $0x30] sm:$0xff]
    %v54 = vld [vmem:[%s0 + $0x38] sm:$0xff]
    %v55 = vld [vmem:[%s0 + $0x40] sm:$0xff]
    %v56 = vld [vmem:[%s0 + $0x48] sm:$0xff]
    %v57 = vld [vmem:[%s0 + $0x50] sm:$0xff]
    %v58 = vld [vmem:[%s0 + $0x58] sm:$0xff]
    %v59 = vld [vmem:[%s0 + $0x60] sm:$0xff]
    %v60 = vld [vmem:[%s0 + $0x68] sm:$0xff]
    %v61 = vld [vmem:[%s0 + $0x70] sm:$0xff]
    %v62 = vld [vmem:[%s0 + $0x78] sm:$0xff]
    %v63 = vld [vmem:[%s0 + $0x80] sm:$0xff]
    %v64 = vld [vmem:[%s0 + $0x88] sm:$0xff]
    %v65 = vld [vmem:[%s0 + $0x90] sm:$0xff]
    %v66 = vld [vmem:[%s0 + $0x98] sm:$0xff]
    %v67 = vld [vmem:[%s0 + $0xa0] sm:$0xff]
    %v68 = vld [vmem:[%s0 + $0xa8] sm:$0xff]
    %v69 = vld [vmem:[%s0 + $0xb0] sm:$0xff]
    %v70 = vld [vmem:[%s0 + $0xb8] sm:$0xff]
    %v71 = vld [vmem:[%s0 + $0xc0] sm:$0xff]
    %v72 = vld [vmem:[%s0 + $0xc8] sm:$0xff]
    %v73 = vld [vmem:[%s0 + $0xd0] sm:$0xff]
    %v74 = vld [vmem:[%s0 + $0xd8] sm:$0xff]
    %v75 = vld [vmem:[%s0 + $0xe0] sm:$0xff]
    %v76 = vld [vmem:[%s0 + $0xe8] sm:$0xff]
    %v77 = vld [vmem:[%s0 + $0xf0] sm:$0xff]
    %v78 = vld [vmem:[%s0 + $0xf8] sm:$0xff]
    %v79 = vld [vmem:[%s0 + $0x100] sm:$0xff]
    %v80 = vld [vmem:[%s0 + $0x108] sm:$0xff]
    %v81 = vld [vmem:[%s0 + $0x110] sm:$0xff]
    %v82 = vld [vmem:[%s0 + $0x118] sm:$0xff]
    %v83 = vld [vmem:[%s0 + $0x120] sm:$0xff]
    %v84 = vld [vmem:[%s0 + $0x128] sm:$0xff]
    %v85 = vld [vmem:[%s0 + $0x130] sm:$0xff]
    %v86 = vld [vmem:[%s0 + $0x138] sm:$0xff]
    %v87 = vld [vmem:[%s0 + $0x140] sm:$0xff]
    %v88 = vld [vmem:[%s0 + $0x148] sm:$0xff]
    %v89 = vld [vmem:[%s0 + $0x150] sm:$0xff]
    %v90 = vld [vmem:[%s0 + $0x158] sm:$0xff]
    %v91 = vld [vmem:[%s0 + $0x160] sm:$0xff]
    %v92 = vld [vmem:[%s0 + $0x168] sm:$0xff]
    %v93 = vld [vmem:[%s0 + $0x170] sm:$0xff]
    %v94 = vld [vmem:[%s0 + $0x178] sm:$0xff]
    %v95 = vld [vmem:[%s1] sm:$0xff]
    %v96 = vld [vmem:[%s1 + $0x8] sm:$0xff]
    %v97 = vld [vmem:[%s1 + $0x10] sm:$0xff]
    %v98 = vld [vmem:[%s1 + $0x18] sm:$0xff]
    %v99 = vld [vmem:[%s1 + $0x20] sm:$0xff]
    %v100 = vld [vmem:[%s1 + $0x28] sm:$0xff]
    %v101 = vld [vmem:[%s1 + $0x30] sm:$0xff]
    %v102 = vld [vmem:[%s1 + $0x38] sm:$0xff]
    %v103 = vld [vmem:[%s1 + $0x40] sm:$0xff]
    %v104 = vld [vmem:[%s1 + $0x48] sm:$0xff]
    %v105 = vld [vmem:[%s1 + $0x50] sm:$0xff]
    %v106 = vld [vmem:[%s1 + $0x58] sm:$0xff]
    %v107 = vld [vmem:[%s1 + $0x60] sm:$0xff]
    %v108 = vld [vmem:[%s1 + $0x68] sm:$0xff]
    %v109 = vld [vmem:[%s1 + $0x70] sm:$0xff]
    %v110 = vld [vmem:[%s1 + $0x78] sm:$0xff]
    %v111 = vld [vmem:[%s1 + $0x80] sm:$0xff]
    %v112 = vld [vmem:[%s1 + $0x88] sm:$0xff]
    %v113 = vld [vmem:[%s1 + $0x90] sm:$0xff]
    %v114 = vld [vmem:[%s1 + $0x98] sm:$0xff]
    %v115 = vld [vmem:[%s1 + $0xa0] sm:$0xff]
    %v116 = vld [vmem:[%s1 + $0xa8] sm:$0xff]
    %v117 = vld [vmem:[%s1 + $0xb0] sm:$0xff]
    %v118 = vld [vmem:[%s1 + $0xb8] sm:$0xff]
    %v119 = vld [vmem:[%s1 + $0xc0] sm:$0xff]
    %v120 = vld [vmem:[%s1 + $0xc8] sm:$0xff]
    %v121 = vld [vmem:[%s1 + $0xd0] sm:$0xff]
    %v122 = vld [vmem:[%s1 + $0xd8] sm:$0xff]
    %v123 = vld [vmem:[%s1 + $0xe0] sm:$0xff]
    %v124 = vld [vmem:[%s1 + $0xe8] sm:$0xff]
    %v125 = vld [vmem:[%s1 + $0xf0] sm:$0xff]
    %v126 = vld [vmem:[%s1 + $0xf8] sm:$0xff]
    %v127 = vld [vmem:[%s1 + $0x100] sm:$0xff]
    %v128 = vld [vmem:[%s1 + $0x108] sm:$0xff]
    %v129 = vld [vmem:[%s1 + $0x110] sm:$0xf]
    %v130 = vld [vmem:[%s1 + $0x118] sm:$0xf]
    %v131 = vld [vmem:[%s2] sm:$0x3]
    %v133 = vlaneseq
    %v134 = vshrl.u32 %v133, 7
    %v135 = vsub.s32 0, %v134
    %v136 = vrot.slane %v131, %v135
    %v137 = vlaneseq
    %v138 = vshrl.u32 %v137, 7
    %v139 = vsub.s32 1, %v138
    %v140 = vrot.slane %v131, %v139
    %vm143 = vcmask 97280
    %v145 = vsel %vm143, %v48, 0
    %v148 = vsel %vm143, %v50, 0
    %v151 = vsel %vm143, %v52, 0
    %v154 = vsel %vm143, %v54, 0
    %v157 = vsel %vm143, %v56, 0
    %v160 = vsel %vm143, %v58, 0
    %v163 = vsel %vm143, %v60, 0
    %v166 = vsel %vm143, %v62, 0
    %v169 = vsel %vm143, %v64, 0
    %v172 = vsel %vm143, %v66, 0
    %v175 = vsel %vm143, %v68, 0
    %v178 = vsel %vm143, %v70, 0
    %v181 = vsel %vm143, %v72, 0
    %v184 = vsel %vm143, %v74, 0
    %v187 = vsel %vm143, %v76, 0
    %v190 = vsel %vm143, %v78, 0
    %v193 = vsel %vm143, %v80, 0
    %v196 = vsel %vm143, %v82, 0
    %v199 = vsel %vm143, %v84, 0
    %v202 = vsel %vm143, %v86, 0
    %v205 = vsel %vm143, %v88, 0
    %v208 = vsel %vm143, %v90, 0
    %v211 = vsel %vm143, %v92, 0
    %v214 = vsel %vm143, %v94, 0
    %vm216 = vcmask 1043456
    %v218 = vsel %vm216, %v129, 0
    %v221 = vsel %vm216, %v130, 0
    %223 = vmatprep.subr.mxu0 %v96
    %224 = vmatpush1.msra.mxu0 %v95
    %225 = vmatprep.subr.mxu0 %v98
    %226 = vmatpush1.msra.mxu0 %v97
    %227 = vmatprep.subr.mxu0 %v100
    %228 = vmatpush1.msra.mxu0 %v99
    %229 = vmatprep.subr.mxu0 %v102
    %230 = vmatpush1.msra.mxu0 %v101
    %231 = vmatprep.subr.mxu0 %v104
    %232 = vmatpush1.msra.mxu0 %v103
    %233 = vmatprep.subr.mxu0 %v106
    %234 = vmatpush1.msra.mxu0 %v105
    %235 = vmatprep.subr.mxu0 %v108
    %236 = vmatpush1.msra.mxu0 %v107
    %237 = vmatprep.subr.mxu0 %v110
    %238 = vmatpush1.msra.mxu0 %v109
    %239 = vmatprep.subr.mxu0 %v112
    %240 = vmatpush1.msra.mxu0 %v111
    %241 = vmatprep.subr.mxu0 %v114
    %242 = vmatpush1.msra.mxu0 %v113
    %243 = vmatprep.subr.mxu0 %v116
    %244 = vmatpush1.msra.mxu0 %v115
    %245 = vmatprep.subr.mxu0 %v118
    %246 = vmatpush1.msra.mxu0 %v117
    %247 = vmatprep.subr.mxu0 %v120
    %248 = vmatpush1.msra.mxu0 %v119
    %249 = vmatprep.subr.mxu0 %v122
    %250 = vmatpush1.msra.mxu0 %v121
    %251 = vmatprep.subr.mxu0 %v124
    %252 = vmatpush1.msra.mxu0 %v123
    %253 = vmatprep.subr.mxu0 %v126
    %254 = vmatpush1.msra.mxu0 %v125
    %255 = vmatprep.subr.mxu0 %v128
    %256 = vmatpush1.msra.mxu0 %v127
    %257 = vmatprep.subr.mxu0 %v221
    %258 = vmatpush1.msra.mxu0 %v218
    %259 = vmatprep.subr.mxu0 0.0
    %260 = vmatpush1.msra.mxu0 0.0
    %261 = vmatprep.subr.mxu0 0.0
    %262 = vmatpush1.msra.mxu0 0.0
    %263 = vmatprep.subr.mxu0 0.0
    %264 = vmatpush1.msra.mxu0 0.0
    %265 = vmatprep.subr.mxu0 0.0
    %266 = vmatpush1.msra.mxu0 0.0
    %267 = vmatprep.subr.mxu0 0.0
    %268 = vmatpush1.msra.mxu0 0.0
    %269 = vmatprep.subr.mxu0 0.0
    %270 = vmatpush1.msra.mxu0 0.0
    %271 = vmatprep.subr.mxu0 0.0
    %272 = vmatpush1.msra.mxu0 0.0
    %273 = vmatprep.subr.mxu0 0.0
    %274 = vmatpush1.msra.mxu0 0.0
    %275 = vmatprep.subr.mxu0 0.0
    %276 = vmatpush1.msra.mxu0 0.0
    %277 = vmatprep.subr.mxu0 0.0
    %278 = vmatpush1.msra.mxu0 0.0
    %279 = vmatprep.subr.mxu0 0.0
    %280 = vmatpush1.msra.mxu0 0.0
    %281 = vmatprep.subr.mxu0 0.0
    %282 = vmatpush1.msra.mxu0 0.0
    %283 = vmatprep.subr.mxu0 0.0
    %284 = vmatpush1.msra.mxu0 0.0
    %285 = vmatprep.subr.mxu0 0.0
    %286 = vmatpush1.msra.mxu0 0.0
    %287 = vmatprep.mubr.f32.mxu0 %v145
    %288 = vmatmul.mubr.f32.gmra.mrb[0].mxu0 %v47
    %v289 = vpop.f32.mrb[0].mxu0
    %v290 = vadd.f32 %v136, %v289
    %v291 = vpop.f32.mrb[0].mxu0
    %v292 = vadd.f32 %v140, %v291
    %293 = vmatprep.mubr.f32.mxu0 %v148
    %294 = vmatmul.mubr.f32.gmra.mrb[0].mxu0 %v49
    %v295 = vpop.f32.mrb[0].mxu0
    %v296 = vadd.f32 %v136, %v295
    %v297 = vpop.f32.mrb[0].mxu0
    %v298 = vadd.f32 %v140, %v297
    %299 = vmatprep.mubr.f32.mxu0 %v151
    %300 = vmatmul.mubr.f32.gmra.mrb[0].mxu0 %v51
    %v301 = vpop.f32.mrb[0].mxu0
    %v302 = vadd.f32 %v136, %v301
    %v303 = vpop.f32.mrb[0].mxu0
    %v304 = vadd.f32 %v140, %v303
    %305 = vmatprep.mubr.f32.mxu0 %v154
    %306 = vmatmul.mubr.f32.gmra.mrb[0].mxu0 %v53
    %v307 = vpop.f32.mrb[0].mxu0
    %v308 = vadd.f32 %v136, %v307
    %v309 = vpop.f32.mrb[0].mxu0
    %v310 = vadd.f32 %v140, %v309
    %311 = vmatprep.mubr.f32.mxu0 %v157
    %312 = vmatmul.mubr.f32.gmra.mrb[0].mxu0 %v55
    %v313 = vpop.f32.mrb[0].mxu0
    %v314 = vadd.f32 %v136, %v313
    %v315 = vpop.f32.mrb[0].mxu0
    %v316 = vadd.f32 %v140, %v315
    %317 = vmatprep.mubr.f32.mxu0 %v160
    %318 = vmatmul.mubr.f32.gmra.mrb[0].mxu0 %v57
    %v319 = vpop.f32.mrb[0].mxu0
    %v320 = vadd.f32 %v136, %v319
    %v321 = vpop.f32.mrb[0].mxu0
    %v322 = vadd.f32 %v140, %v321
    %323 = vmatprep.mubr.f32.mxu0 %v163
    %324 = vmatmul.mubr.f32.gmra.mrb[0].mxu0 %v59
    %v325 = vpop.f32.mrb[0].mxu0
    %v326 = vadd.f32 %v136, %v325
    %v327 = vpop.f32.mrb[0].mxu0
    %v328 = vadd.f32 %v140, %v327
    %329 = vmatprep.mubr.f32.mxu0 %v166
    %330 = vmatmul.mubr.f32.gmra.mrb[0].mxu0 %v61
    %v331 = vpop.f32.mrb[0].mxu0
    %v332 = vadd.f32 %v136, %v331
    %v333 = vpop.f32.mrb[0].mxu0
    %v334 = vadd.f32 %v140, %v333
    %335 = vmatprep.mubr.f32.mxu0 %v169
    %336 = vmatmul.mubr.f32.gmra.mrb[0].mxu0 %v63
    %v337 = vpop.f32.mrb[0].mxu0
    %v338 = vadd.f32 %v136, %v337
    %v339 = vpop.f32.mrb[0].mxu0
    %v340 = vadd.f32 %v140, %v339
    %341 = vmatprep.mubr.f32.mxu0 %v172
    %342 = vmatmul.mubr.f32.gmra.mrb[0].mxu0 %v65
    %v343 = vpop.f32.mrb[0].mxu0
    %v344 = vadd.f32 %v136, %v343
    %v345 = vpop.f32.mrb[0].mxu0
    %v346 = vadd.f32 %v140, %v345
    %347 = vmatprep.mubr.f32.mxu0 %v175
    %348 = vmatmul.mubr.f32.gmra.mrb[0].mxu0 %v67
    %v349 = vpop.f32.mrb[0].mxu0
    %v350 = vadd.f32 %v136, %v349
    %v351 = vpop.f32.mrb[0].mxu0
    %v352 = vadd.f32 %v140, %v351
    %353 = vmatprep.mubr.f32.mxu0 %v178
    %354 = vmatmul.mubr.f32.gmra.mrb[0].mxu0 %v69
    %v355 = vpop.f32.mrb[0].mxu0
    %v356 = vadd.f32 %v136, %v355
    %v357 = vpop.f32.mrb[0].mxu0
    %v358 = vadd.f32 %v140, %v357
    %359 = vmatprep.mubr.f32.mxu0 %v181
    %360 = vmatmul.mubr.f32.gmra.mrb[0].mxu0 %v71
    %v361 = vpop.f32.mrb[0].mxu0
    %v362 = vadd.f32 %v136, %v361
    %v363 = vpop.f32.mrb[0].mxu0
    %v364 = vadd.f32 %v140, %v363
    %365 = vmatprep.mubr.f32.mxu0 %v184
    %366 = vmatmul.mubr.f32.gmra.mrb[0].mxu0 %v73
    %v367 = vpop.f32.mrb[0].mxu0
    %v368 = vadd.f32 %v136, %v367
    %v369 = vpop.f32.mrb[0].mxu0
    %v370 = vadd.f32 %v140, %v369
    %371 = vmatprep.mubr.f32.mxu0 %v187
    %372 = vmatmul.mubr.f32.gmra.mrb[0].mxu0 %v75
    %v373 = vpop.f32.mrb[0].mxu0
    %v374 = vadd.f32 %v136, %v373
    %v375 = vpop.f32.mrb[0].mxu0
    %v376 = vadd.f32 %v140, %v375
    %377 = vmatprep.mubr.f32.mxu0 %v190
    %378 = vmatmul.mubr.f32.gmra.mrb[0].mxu0 %v77
    %v379 = vpop.f32.mrb[0].mxu0
    %v380 = vadd.f32 %v136, %v379
    %v381 = vpop.f32.mrb[0].mxu0
    %v382 = vadd.f32 %v140, %v381
    %383 = vmatprep.mubr.f32.mxu0 %v193
    %384 = vmatmul.mubr.f32.gmra.mrb[0].mxu0 %v79
    %v385 = vpop.f32.mrb[0].mxu0
    %v386 = vadd.f32 %v136, %v385
    %v387 = vpop.f32.mrb[0].mxu0
    %v388 = vadd.f32 %v140, %v387
    %389 = vmatprep.mubr.f32.mxu0 %v196
    %390 = vmatmul.mubr.f32.gmra.mrb[0].mxu0 %v81
    %v391 = vpop.f32.mrb[0].mxu0
    %v392 = vadd.f32 %v136, %v391
    %v393 = vpop.f32.mrb[0].mxu0
    %v394 = vadd.f32 %v140, %v393
    %395 = vmatprep.mubr.f32.mxu0 %v199
    %396 = vmatmul.mubr.f32.gmra.mrb[0].mxu0 %v83
    %v397 = vpop.f32.mrb[0].mxu0
    %v398 = vadd.f32 %v136, %v397
    %v399 = vpop.f32.mrb[0].mxu0
    %v400 = vadd.f32 %v140, %v399
    %401 = vmatprep.mubr.f32.mxu0 %v202
    %402 = vmatmul.mubr.f32.gmra.mrb[0].mxu0 %v85
    %v403 = vpop.f32.mrb[0].mxu0
    %v404 = vadd.f32 %v136, %v403
    %v405 = vpop.f32.mrb[0].mxu0
    %v406 = vadd.f32 %v140, %v405
    %407 = vmatprep.mubr.f32.mxu0 %v205
    %408 = vmatmul.mubr.f32.gmra.mrb[0].mxu0 %v87
    %v409 = vpop.f32.mrb[0].mxu0
    %v410 = vadd.f32 %v136, %v409
    %v411 = vpop.f32.mrb[0].mxu0
    %v412 = vadd.f32 %v140, %v411
    %413 = vmatprep.mubr.f32.mxu0 %v208
    %414 = vmatmul.mubr.f32.gmra.mrb[0].mxu0 %v89
    %v415 = vpop.f32.mrb[0].mxu0
    %v416 = vadd.f32 %v136, %v415
    %v417 = vpop.f32.mrb[0].mxu0
    %v418 = vadd.f32 %v140, %v417
    %419 = vmatprep.mubr.f32.mxu0 %v211
    %420 = vmatmul.mubr.f32.gmra.mrb[0].mxu0 %v91
    %v421 = vpop.f32.mrb[0].mxu0
    %v422 = vadd.f32 %v136, %v421
    %v423 = vpop.f32.mrb[0].mxu0
    %v424 = vadd.f32 %v140, %v423
    %425 = vmatprep.mubr.f32.mxu0 %v214
    %426 = vmatmul.mubr.f32.gmra.mrb[0].mxu0 %v93
    %v427 = vpop.f32.mrb[0].mxu0
    %v428 = vadd.f32 %v136, %v427
    %v429 = vpop.f32.mrb[0].mxu0
    %v430 = vadd.f32 %v140, %v429
    %431 = vdwg.mxu0
    %v432 = vmax.f32 %v290, %v292
    %v433 = vmax.f32 %v296, %v298
    %v434 = vmax.f32 %v302, %v304
    %v435 = vmax.f32 %v308, %v310
    %v436 = vmax.f32 %v314, %v316
    %v437 = vmax.f32 %v320, %v322
    %v438 = vmax.f32 %v326, %v328
    %v439 = vmax.f32 %v332, %v334
    %v440 = vmax.f32 %v338, %v340
    %v441 = vmax.f32 %v344, %v346
    %v442 = vmax.f32 %v350, %v352
    %v443 = vmax.f32 %v356, %v358
    %v444 = vmax.f32 %v362, %v364
    %v445 = vmax.f32 %v368, %v370
    %v446 = vmax.f32 %v374, %v376
    %v447 = vmax.f32 %v380, %v382
    %v448 = vmax.f32 %v386, %v388
    %v449 = vmax.f32 %v392, %v394
    %v450 = vmax.f32 %v398, %v400
    %v451 = vmax.f32 %v404, %v406
    %v452 = vmax.f32 %v410, %v412
    %v453 = vmax.f32 %v416, %v418
    %v454 = vmax.f32 %v422, %v424
    %v455 = vmax.f32 %v428, %v430
    %v456 = vmax.f32 %v432, %v444
    %v457 = vmax.f32 %v433, %v445
    %v458 = vmax.f32 %v434, %v446
    %v459 = vmax.f32 %v435, %v447
    %v460 = vmax.f32 %v436, %v448
    %v461 = vmax.f32 %v437, %v449
    %v462 = vmax.f32 %v438, %v450
    %v463 = vmax.f32 %v439, %v451
    %v464 = vmax.f32 %v440, %v452
    %v465 = vmax.f32 %v441, %v453
    %v466 = vmax.f32 %v442, %v454
    %v467 = vmax.f32 %v443, %v455
    %v468 = vmax.f32 %v456, 0.0
    %v469 = vmax.f32 %v457, 0.0
    %v470 = vmax.f32 %v458, 0.0
    %v471 = vmax.f32 %v459, 0.0
    %v472 = vmax.f32 %v460, 0.0
    %v473 = vmax.f32 %v461, 0.0
    %v474 = vmax.f32 %v462, 0.0
    %v475 = vmax.f32 %v463, 0.0
    %v476 = vmax.f32 %v464, 0.0
    %v477 = vmax.f32 %v465, 0.0
    %v478 = vmax.f32 %v466, 0.0
    %v479 = vmax.f32 %v467, 0.0
    %480 = vst [vmem:[#allocation2] sm:$0xff] %v468
    %481 = vst [vmem:[#allocation2 + $0x28] sm:$0xff] %v469
    %482 = vst [vmem:[#allocation2 + $0x50] sm:$0xff] %v470
    %483 = vst [vmem:[#allocation2 + $0x78] sm:$0xff] %v471
    %484 = vst [vmem:[#allocation2 + $0xa0] sm:$0xff] %v472
    %485 = vst [vmem:[#allocation2 + $0xc8] sm:$0xff] %v473
    %486 = vst [vmem:[#allocation2 + $0xf0] sm:$0xff] %v474
    %487 = vst [vmem:[#allocation2 + $0x118] sm:$0xff] %v475
    %488 = vst [vmem:[#allocation2 + $0x8] sm:$0xff] %v469
    %489 = vst [vmem:[#allocation2 + $0x30] sm:$0xff] %v470
    %490 = vst [vmem:[#allocation2 + $0x58] sm:$0xff] %v471
    %491 = vst [vmem:[#allocation2 + $0x80] sm:$0xff] %v472
    %492 = vst [vmem:[#allocation2 + $0xa8] sm:$0xff] %v473
    %493 = vst [vmem:[#allocation2 + $0xd0] sm:$0xff] %v474
    %494 = vst [vmem:[#allocation2 + $0xf8] sm:$0xff] %v475
    %495 = vst [vmem:[#allocation2 + $0x120] sm:$0xff] %v476
    %496 = vst [vmem:[#allocation2 + $0x10] sm:$0xff] %v470
    %497 = vst [vmem:[#allocation2 + $0x38] sm:$0xff] %v471
    %498 = vst [vmem:[#allocation2 + $0x60] sm:$0xff] %v472
    %499 = vst [vmem:[#allocation2 + $0x88] sm:$0xff] %v473
    %500 = vst [vmem:[#allocation2 + $0xb0] sm:$0xff] %v474
    %501 = vst [vmem:[#allocation2 + $0xd8] sm:$0xff] %v475
    %502 = vst [vmem:[#allocation2 + $0x100] sm:$0xff] %v476
    %503 = vst [vmem:[#allocation2 + $0x128] sm:$0xff] %v477
    %504 = vst [vmem:[#allocation2 + $0x18] sm:$0xff] %v471
    %505 = vst [vmem:[#allocation2 + $0x40] sm:$0xff] %v472
    %506 = vst [vmem:[#allocation2 + $0x68] sm:$0xff] %v473
    %507 = vst [vmem:[#allocation2 + $0x90] sm:$0xff] %v474
    %508 = vst [vmem:[#allocation2 + $0xb8] sm:$0xff] %v475
    %509 = vst [vmem:[#allocation2 + $0xe0] sm:$0xff] %v476
    %510 = vst [vmem:[#allocation2 + $0x108] sm:$0xff] %v477
    %511 = vst [vmem:[#allocation2 + $0x130] sm:$0xff] %v478
    %512 = vst [vmem:[#allocation2 + $0x20] sm:$0xff] %v472
    %513 = vst [vmem:[#allocation2 + $0x48] sm:$0xff] %v473
    %514 = vst [vmem:[#allocation2 + $0x70] sm:$0xff] %v474
    %515 = vst [vmem:[#allocation2 + $0x98] sm:$0xff] %v475
    %516 = vst [vmem:[#allocation2 + $0xc0] sm:$0xff] %v476
    %517 = vst [vmem:[#allocation2 + $0xe8] sm:$0xff] %v477
    %518 = vst [vmem:[#allocation2 + $0x110] sm:$0xff] %v478
    %519 = vst [vmem:[#allocation2 + $0x138] sm:$0xff] %v479
    %v520 = vld [vmem:[#allocation2] sm:$0xff]
    %v521 = vld [vmem:[#allocation2 + $0x8] sm:$0xff]
    %v522 = vld [vmem:[#allocation2 + $0x10] sm:$0xff]
    %v523 = vld [vmem:[#allocation2 + $0x18] sm:$0xff]
    %v524 = vld [vmem:[#allocation2 + $0x20] sm:$0xff]
    %v525 = vld [vmem:[#allocation2 + $0x28] sm:$0xff]
    %v526 = vld [vmem:[#allocation2 + $0x30] sm:$0xff]
    %v527 = vld [vmem:[#allocation2 + $0x38] sm:$0xff]
    %v528 = vld [vmem:[#allocation2 + $0x40] sm:$0xff]
    %v529 = vld [vmem:[#allocation2 + $0x48] sm:$0xff]
    %v530 = vld [vmem:[#allocation2 + $0x50] sm:$0xff]
    %v531 = vld [vmem:[#allocation2 + $0x58] sm:$0xff]
    %v532 = vld [vmem:[#allocation2 + $0x60] sm:$0xff]
    %v533 = vld [vmem:[#allocation2 + $0x68] sm:$0xff]
    %v534 = vld [vmem:[#allocation2 + $0x70] sm:$0xff]
    %v535 = vld [vmem:[#allocation2 + $0x78] sm:$0xff]
    %v536 = vld [vmem:[#allocation2 + $0x80] sm:$0xff]
    %v537 = vld [vmem:[#allocation2 + $0x88] sm:$0xff]
    %v538 = vld [vmem:[#allocation2 + $0x90] sm:$0xff]
    %v539 = vld [vmem:[#allocation2 + $0x98] sm:$0xff]
    %v540 = vld [vmem:[#allocation2 + $0xa0] sm:$0xff]
    %v541 = vld [vmem:[#allocation2 + $0xa8] sm:$0xff]
    %v542 = vld [vmem:[#allocation2 + $0xb0] sm:$0xff]
    %v543 = vld [vmem:[#allocation2 + $0xb8] sm:$0xff]
    %v544 = vld [vmem:[#allocation2 + $0xc0] sm:$0xff]
    %v545 = vld [vmem:[#allocation2 + $0xc8] sm:$0xff]
    %v546 = vld [vmem:[#allocation2 + $0xd0] sm:$0xff]
    %v547 = vld [vmem:[#allocation2 + $0xd8] sm:$0xff]
    %v548 = vld [vmem:[#allocation2 + $0xe0] sm:$0xff]
    %v549 = vld [vmem:[#allocation2 + $0xe8] sm:$0xff]
    %v550 = vld [vmem:[#allocation2 + $0xf0] sm:$0xff]
    %v551 = vld [vmem:[#allocation2 + $0xf8] sm:$0xff]
    %v552 = vld [vmem:[#allocation2 + $0x100] sm:$0xff]
    %v553 = vld [vmem:[#allocation2 + $0x108] sm:$0xff]
    %v554 = vld [vmem:[#allocation2 + $0x110] sm:$0xff]
    %v555 = vld [vmem:[#allocation2 + $0x118] sm:$0xff]
    %v556 = vld [vmem:[#allocation2 + $0x120] sm:$0xff]
    %v557 = vld [vmem:[#allocation2 + $0x128] sm:$0xff]
    %v558 = vld [vmem:[#allocation2 + $0x130] sm:$0xff]
    %v559 = vld [vmem:[#allocation2 + $0x138] sm:$0xff]
    %v560 = vld [vmem:[#allocation4] sm:$0xff]
    %v561 = vld [vmem:[#allocation4 + $0x8] sm:$0xff]
    %v562 = vld [vmem:[#allocation4 + $0x10] sm:$0xff]
    %v563 = vld [vmem:[#allocation4 + $0x18] sm:$0xff]
    %v564 = vld [vmem:[#allocation4 + $0x20] sm:$0xff]
    %v565 = vld [vmem:[#allocation4 + $0x28] sm:$0xff]
    %v566 = vld [vmem:[#allocation4 + $0x30] sm:$0xff]
    %v567 = vld [vmem:[#allocation4 + $0x38] sm:$0xff]
    %v568 = vld [vmem:[#allocation4 + $0x40] sm:$0xff]
    %v569 = vld [vmem:[#allocation4 + $0x48] sm:$0xff]
    %v570 = vld [vmem:[#allocation4 + $0x50] sm:$0xff]
    %v571 = vld [vmem:[#allocation4 + $0x58] sm:$0xff]
    %v572 = vld [vmem:[#allocation4 + $0x60] sm:$0xff]
    %v573 = vld [vmem:[#allocation4 + $0x68] sm:$0xff]
    %v574 = vld [vmem:[#allocation4 + $0x70] sm:$0xff]
    %v575 = vld [vmem:[#allocation4 + $0x78] sm:$0xff]
    %v576 = vld [vmem:[#allocation4 + $0x80] sm:$0xff]
    %v577 = vld [vmem:[#allocation4 + $0x88] sm:$0xff]
    %v578 = vld [vmem:[#allocation4 + $0x90] sm:$0xff]
    %v579 = vld [vmem:[#allocation4 + $0x98] sm:$0xff]
    %v580 = vld [vmem:[#allocation4 + $0xa0] sm:$0xff]
    %v581 = vld [vmem:[#allocation4 + $0xa8] sm:$0xff]
    %v582 = vld [vmem:[#allocation4 + $0xb0] sm:$0xff]
    %v583 = vld [vmem:[#allocation4 + $0xb8] sm:$0xff]
    %v584 = vld [vmem:[#allocation4 + $0xc0] sm:$0xff]
    %v585 = vld [vmem:[#allocation4 + $0xc8] sm:$0xff]
    %v586 = vld [vmem:[#allocation4 + $0xd0] sm:$0xff]
    %v587 = vld [vmem:[#allocation4 + $0xd8] sm:$0xff]
    %v588 = vld [vmem:[#allocation4 + $0xe0] sm:$0xff]
    %v589 = vld [vmem:[#allocation4 + $0xe8] sm:$0xff]
    %v590 = vld [vmem:[#allocation4 + $0xf0] sm:$0xff]
    %v591 = vld [vmem:[#allocation4 + $0xf8] sm:$0xff]
    %v592 = vld [vmem:[#allocation4 + $0x100] sm:$0xff]
    %v593 = vld [vmem:[#allocation4 + $0x108] sm:$0xff]
    %v594 = vld [vmem:[#allocation4 + $0x110] sm:$0xff]
    %v595 = vld [vmem:[#allocation4 + $0x118] sm:$0xff]
    %v596 = vld [vmem:[#allocation4 + $0x120] sm:$0xff]
    %v597 = vld [vmem:[#allocation4 + $0x128] sm:$0xff]
    %v598 = vld [vmem:[#allocation4 + $0x130] sm:$0xff]
    %v599 = vld [vmem:[#allocation4 + $0x138] sm:$0xff]
    %v600 = vld [vmem:[#allocation4 + $0x140] sm:$0xff]
    %v601 = vld [vmem:[#allocation4 + $0x148] sm:$0xff]
    %v602 = vld [vmem:[#allocation4 + $0x150] sm:$0xff]
    %v603 = vld [vmem:[#allocation4 + $0x158] sm:$0xff]
    %v604 = vld [vmem:[#allocation4 + $0x160] sm:$0xff]
    %v605 = vld [vmem:[#allocation4 + $0x168] sm:$0xff]
    %v606 = vld [vmem:[#allocation4 + $0x170] sm:$0xff]
    %v607 = vld [vmem:[#allocation4 + $0x178] sm:$0xff]
    %v608 = vld [vmem:[#allocation4 + $0x180] sm:$0xff]
    %v609 = vld [vmem:[#allocation4 + $0x188] sm:$0xff]
    %v610 = vld [vmem:[#allocation4 + $0x190] sm:$0xff]
    %v611 = vld [vmem:[#allocation4 + $0x198] sm:$0xff]
    %v612 = vld [vmem:[#allocation4 + $0x1a0] sm:$0xff]
    %v613 = vld [vmem:[#allocation4 + $0x1a8] sm:$0xff]
    %v614 = vld [vmem:[#allocation4 + $0x1b0] sm:$0xff]
    %v615 = vld [vmem:[#allocation4 + $0x1b8] sm:$0xff]
    %v616 = vld [vmem:[#allocation4 + $0x1c0] sm:$0xff]
    %v617 = vld [vmem:[#allocation4 + $0x1c8] sm:$0xff]
    %v618 = vld [vmem:[#allocation4 + $0x1d0] sm:$0xff]
    %v619 = vld [vmem:[#allocation4 + $0x1d8] sm:$0xff]
    %v620 = vld [vmem:[#allocation4 + $0x1e0] sm:$0xff]
    %v621 = vld [vmem:[#allocation4 + $0x1e8] sm:$0xff]
    %v622 = vld [vmem:[#allocation4 + $0x1f0] sm:$0xff]
    %v623 = vld [vmem:[#allocation4 + $0x1f8] sm:$0xff]
    %v624 = vld [vmem:[#allocation4 + $0x200] sm:$0xff]
    %v625 = vld [vmem:[#allocation4 + $0x208] sm:$0xff]
    %v626 = vld [vmem:[#allocation4 + $0x210] sm:$0xff]
    %v627 = vld [vmem:[#allocation4 + $0x218] sm:$0xff]
    %v628 = vld [vmem:[#allocation4 + $0x220] sm:$0xff]
    %v629 = vld [vmem:[#allocation4 + $0x228] sm:$0xff]
    %v630 = vld [vmem:[#allocation4 + $0x230] sm:$0xff]
    %v631 = vld [vmem:[#allocation4 + $0x238] sm:$0xff]
    %v632 = vld [vmem:[#allocation4 + $0x240] sm:$0xff]
    %v633 = vld [vmem:[#allocation4 + $0x248] sm:$0xff]
    %v634 = vld [vmem:[#allocation4 + $0x250] sm:$0xff]
    %v635 = vld [vmem:[#allocation4 + $0x258] sm:$0xff]
    %v636 = vld [vmem:[#allocation4 + $0x260] sm:$0xff]
    %v637 = vld [vmem:[#allocation4 + $0x268] sm:$0xff]
    %v638 = vld [vmem:[#allocation4 + $0x270] sm:$0xff]
    %v639 = vld [vmem:[#allocation4 + $0x278] sm:$0xff]
    %v640 = vld [vmem:[#allocation4 + $0x280] sm:$0xff]
    %v641 = vld [vmem:[#allocation4 + $0x288] sm:$0xff]
    %v642 = vld [vmem:[#allocation4 + $0x290] sm:$0xff]
    %v643 = vld [vmem:[#allocation4 + $0x298] sm:$0xff]
    %v644 = vld [vmem:[#allocation4 + $0x2a0] sm:$0xff]
    %v645 = vld [vmem:[#allocation4 + $0x2a8] sm:$0xff]
    %v646 = vld [vmem:[#allocation4 + $0x2b0] sm:$0xff]
    %v647 = vld [vmem:[#allocation4 + $0x2b8] sm:$0xff]
    %v648 = vld [vmem:[#allocation4 + $0x2c0] sm:$0xff]
    %v649 = vld [vmem:[#allocation4 + $0x2c8] sm:$0xff]
    %v650 = vld [vmem:[#allocation4 + $0x2d0] sm:$0xff]
    %v651 = vld [vmem:[#allocation4 + $0x2d8] sm:$0xff]
    %v652 = vld [vmem:[#allocation4 + $0x2e0] sm:$0xff]
    %v653 = vld [vmem:[#allocation4 + $0x2e8] sm:$0xff]
    %v654 = vld [vmem:[#allocation4 + $0x2f0] sm:$0xff]
    %v655 = vld [vmem:[#allocation4 + $0x2f8] sm:$0xff]
    %v656 = vld [vmem:[#allocation4 + $0x300] sm:$0xff]
    %v657 = vld [vmem:[#allocation4 + $0x308] sm:$0xff]
    %v658 = vld [vmem:[#allocation4 + $0x310] sm:$0xff]
    %v659 = vld [vmem:[#allocation4 + $0x318] sm:$0xff]
    %v660 = vld [vmem:[#allocation4 + $0x320] sm:$0xff]
    %v661 = vld [vmem:[#allocation4 + $0x328] sm:$0xff]
    %v662 = vld [vmem:[#allocation4 + $0x330] sm:$0xff]
    %v663 = vld [vmem:[#allocation4 + $0x338] sm:$0xff]
    %v664 = vld [vmem:[#allocation4 + $0x340] sm:$0xff]
    %v665 = vld [vmem:[#allocation4 + $0x348] sm:$0xff]
    %v666 = vld [vmem:[#allocation4 + $0x350] sm:$0xff]
    %v667 = vld [vmem:[#allocation4 + $0x358] sm:$0xff]
    %v668 = vld [vmem:[#allocation4 + $0x360] sm:$0xff]
    %v669 = vld [vmem:[#allocation4 + $0x368] sm:$0xff]
    %v670 = vld [vmem:[#allocation4 + $0x370] sm:$0xff]
    %v671 = vld [vmem:[#allocation4 + $0x378] sm:$0xff]
    %v672 = vld [vmem:[#allocation4 + $0x380] sm:$0xff]
    %v673 = vld [vmem:[#allocation4 + $0x388] sm:$0xff]
    %v674 = vld [vmem:[#allocation4 + $0x390] sm:$0xff]
    %v675 = vld [vmem:[#allocation4 + $0x398] sm:$0xff]
    %v676 = vld [vmem:[#allocation4 + $0x3a0] sm:$0xff]
    %v677 = vld [vmem:[#allocation4 + $0x3a8] sm:$0xff]
    %v678 = vld [vmem:[#allocation4 + $0x3b0] sm:$0xff]
    %v679 = vld [vmem:[#allocation4 + $0x3b8] sm:$0xff]
    %v680 = vld [vmem:[#allocation4 + $0x3c0] sm:$0xff]
    %v681 = vld [vmem:[#allocation4 + $0x3c8] sm:$0xff]
    %v682 = vld [vmem:[#allocation4 + $0x3d0] sm:$0xff]
    %v683 = vld [vmem:[#allocation4 + $0x3d8] sm:$0xff]
    %v684 = vld [vmem:[#allocation4 + $0x3e0] sm:$0xff]
    %v685 = vld [vmem:[#allocation4 + $0x3e8] sm:$0xff]
    %v686 = vld [vmem:[#allocation4 + $0x3f0] sm:$0xff]
    %v687 = vld [vmem:[#allocation4 + $0x3f8] sm:$0xff]
    %v688 = vld [vmem:[#allocation4 + $0x400] sm:$0xff]
    %v689 = vld [vmem:[#allocation4 + $0x408] sm:$0xff]
    %v690 = vld [vmem:[#allocation4 + $0x410] sm:$0xff]
    %v691 = vld [vmem:[#allocation4 + $0x418] sm:$0xff]
    %v692 = vld [vmem:[#allocation4 + $0x420] sm:$0xff]
    %v693 = vld [vmem:[#allocation4 + $0x428] sm:$0xff]
    %v694 = vld [vmem:[#allocation4 + $0x430] sm:$0xff]
    %v695 = vld [vmem:[#allocation4 + $0x438] sm:$0xff]
    %v696 = vld [vmem:[#allocation4 + $0x440] sm:$0xff]
    %v697 = vld [vmem:[#allocation4 + $0x448] sm:$0xff]
    %v698 = vld [vmem:[#allocation4 + $0x450] sm:$0xff]
    %v699 = vld [vmem:[#allocation4 + $0x458] sm:$0xff]
    %v700 = vld [vmem:[#allocation4 + $0x460] sm:$0xff]
    %v701 = vld [vmem:[#allocation4 + $0x468] sm:$0xff]
    %v702 = vld [vmem:[#allocation4 + $0x470] sm:$0xff]
    %v703 = vld [vmem:[#allocation4 + $0x478] sm:$0xff]
    %v704 = vld [vmem:[#allocation4 + $0x480] sm:$0xff]
    %v705 = vld [vmem:[#allocation4 + $0x488] sm:$0xff]
    %v706 = vld [vmem:[#allocation4 + $0x490] sm:$0xff]
    %v707 = vld [vmem:[#allocation4 + $0x498] sm:$0xff]
    %v708 = vld [vmem:[#allocation4 + $0x4a0] sm:$0xff]
    %v709 = vld [vmem:[#allocation4 + $0x4a8] sm:$0xff]
    %v710 = vld [vmem:[#allocation4 + $0x4b0] sm:$0xff]
    %v711 = vld [vmem:[#allocation4 + $0x4b8] sm:$0xff]
    %v712 = vld [vmem:[#allocation4 + $0x4c0] sm:$0xff]
    %v713 = vld [vmem:[#allocation4 + $0x4c8] sm:$0xff]
    %v714 = vld [vmem:[#allocation4 + $0x4d0] sm:$0xff]
    %v715 = vld [vmem:[#allocation4 + $0x4d8] sm:$0xff]
    %v716 = vld [vmem:[#allocation4 + $0x4e0] sm:$0xff]
    %v717 = vld [vmem:[#allocation4 + $0x4e8] sm:$0xff]
    %v718 = vld [vmem:[#allocation4 + $0x4f0] sm:$0xff]
    %v719 = vld [vmem:[#allocation4 + $0x4f8] sm:$0xff]
    %v720 = vld [vmem:[%s4] sm:$0x3]
    %v722 = vlaneseq
    %v723 = vshrl.u32 %v722, 7
    %v724 = vsub.s32 0, %v723
    %v725 = vrot.slane %v720, %v724
    %v726 = vlaneseq
    %v727 = vshrl.u32 %v726, 7
    %v728 = vsub.s32 1, %v727
    %v729 = vrot.slane %v720, %v728
    %732 = vmatprep.subr.mxu0 %v561
    %733 = vmatpush1.msra.mxu0 %v560
    %734 = vmatprep.subr.mxu0 %v563
    %735 = vmatpush1.msra.mxu0 %v562
    %736 = vmatprep.subr.mxu0 %v565
    %737 = vmatpush1.msra.mxu0 %v564
    %738 = vmatprep.subr.mxu0 %v567
    %739 = vmatpush1.msra.mxu0 %v566
    %740 = vmatprep.subr.mxu0 %v569
    %741 = vmatpush1.msra.mxu0 %v568
    %742 = vmatprep.subr.mxu0 %v571
    %743 = vmatpush1.msra.mxu0 %v570
    %744 = vmatprep.subr.mxu0 %v573
    %745 = vmatpush1.msra.mxu0 %v572
    %746 = vmatprep.subr.mxu0 %v575
    %747 = vmatpush1.msra.mxu0 %v574
    %748 = vmatprep.subr.mxu0 %v577
    %749 = vmatpush1.msra.mxu0 %v576
    %750 = vmatprep.subr.mxu0 %v579
    %751 = vmatpush1.msra.mxu0 %v578
    %752 = vmatprep.subr.mxu0 %v581
    %753 = vmatpush1.msra.mxu0 %v580
    %754 = vmatprep.subr.mxu0 %v583
    %755 = vmatpush1.msra.mxu0 %v582
    %756 = vmatprep.subr.mxu0 %v585
    %757 = vmatpush1.msra.mxu0 %v584
    %758 = vmatprep.subr.mxu0 %v587
    %759 = vmatpush1.msra.mxu0 %v586
    %760 = vmatprep.subr.mxu0 %v589
    %761 = vmatpush1.msra.mxu0 %v588
    %762 = vmatprep.subr.mxu0 %v591
    %763 = vmatpush1.msra.mxu0 %v590
    %764 = vmatprep.subr.mxu0 %v593
    %765 = vmatpush1.msra.mxu0 %v592
    %766 = vmatprep.subr.mxu0 %v595
    %767 = vmatpush1.msra.mxu0 %v594
    %768 = vmatprep.subr.mxu0 %v597
    %769 = vmatpush1.msra.mxu0 %v596
    %770 = vmatprep.subr.mxu0 %v599
    %771 = vmatpush1.msra.mxu0 %v598
    %772 = vmatprep.subr.mxu0 %v601
    %773 = vmatpush1.msra.mxu0 %v600
    %774 = vmatprep.subr.mxu0 %v603
    %775 = vmatpush1.msra.mxu0 %v602
    %776 = vmatprep.subr.mxu0 %v605
    %777 = vmatpush1.msra.mxu0 %v604
    %778 = vmatprep.subr.mxu0 %v607
    %779 = vmatpush1.msra.mxu0 %v606
    %780 = vmatprep.subr.mxu0 %v609
    %781 = vmatpush1.msra.mxu0 %v608
    %782 = vmatprep.subr.mxu0 %v611
    %783 = vmatpush1.msra.mxu0 %v610
    %784 = vmatprep.subr.mxu0 %v613
    %785 = vmatpush1.msra.mxu0 %v612
    %786 = vmatprep.subr.mxu0 %v615
    %787 = vmatpush1.msra.mxu0 %v614
    %788 = vmatprep.subr.mxu0 %v617
    %789 = vmatpush1.msra.mxu0 %v616
    %790 = vmatprep.subr.mxu0 %v619
    %791 = vmatpush1.msra.mxu0 %v618
    %792 = vmatprep.subr.mxu0 %v621
    %793 = vmatpush1.msra.mxu0 %v620
    %794 = vmatprep.subr.mxu0 %v623
    %795 = vmatpush1.msra.mxu0 %v622
    %796 = vmatprep.mubr.f32.mxu0 %v521
    %797 = vmatmul.mubr.f32.gmra.mrb[0].mxu0 %v520
    %v798 = vpop.f32.mrb[0].mxu0
    %v799 = vadd.f32 %v725, %v798
    %v800 = vpop.f32.mrb[0].mxu0
    %v801 = vadd.f32 %v729, %v800
    %802 = vmatprep.mubr.f32.mxu0 %v526
    %803 = vmatmul.mubr.f32.gmra.mrb[0].mxu0 %v525
    %v804 = vpop.f32.mrb[0].mxu0
    %v805 = vadd.f32 %v725, %v804
    %v806 = vpop.f32.mrb[0].mxu0
    %v807 = vadd.f32 %v729, %v806
    %808 = vmatprep.mubr.f32.mxu0 %v531
    %809 = vmatmul.mubr.f32.gmra.mrb[0].mxu0 %v530
    %v810 = vpop.f32.mrb[0].mxu0
    %v811 = vadd.f32 %v725, %v810
    %v812 = vpop.f32.mrb[0].mxu0
    %v813 = vadd.f32 %v729, %v812
    %814 = vmatprep.mubr.f32.mxu0 %v536
    %815 = vmatmul.mubr.f32.gmra.mrb[0].mxu0 %v535
    %v816 = vpop.f32.mrb[0].mxu0
    %v817 = vadd.f32 %v725, %v816
    %v818 = vpop.f32.mrb[0].mxu0
    %v819 = vadd.f32 %v729, %v818
    %820 = vmatprep.mubr.f32.mxu0 %v541
    %821 = vmatmul.mubr.f32.gmra.mrb[0].mxu0 %v540
    %v822 = vpop.f32.mrb[0].mxu0
    %v823 = vadd.f32 %v725, %v822
    %v824 = vpop.f32.mrb[0].mxu0
    %v825 = vadd.f32 %v729, %v824
    %826 = vmatprep.mubr.f32.mxu0 %v546
    %827 = vmatmul.mubr.f32.gmra.mrb[0].mxu0 %v545
    %v828 = vpop.f32.mrb[0].mxu0
    %v829 = vadd.f32 %v725, %v828
    %v830 = vpop.f32.mrb[0].mxu0
    %v831 = vadd.f32 %v729, %v830
    %832 = vmatprep.mubr.f32.mxu0 %v551
    %833 = vmatmul.mubr.f32.gmra.mrb[0].mxu0 %v550
    %v834 = vpop.f32.mrb[0].mxu0
    %v835 = vadd.f32 %v725, %v834
    %v836 = vpop.f32.mrb[0].mxu0
    %v837 = vadd.f32 %v729, %v836
    %838 = vmatprep.mubr.f32.mxu0 %v556
    %839 = vmatmul.mubr.f32.gmra.mrb[0].mxu0 %v555
    %v840 = vpop.f32.mrb[0].mxu0
    %v841 = vadd.f32 %v725, %v840
    %v842 = vpop.f32.mrb[0].mxu0
    %v843 = vadd.f32 %v729, %v842
    %844 = vdwg.mxu0
    %845 = vmatprep.subr.mxu0 %v625
    %846 = vmatpush1.msra.mxu0 %v624
    %847 = vmatprep.subr.mxu0 %v627
    %848 = vmatpush1.msra.mxu0 %v626
    %849 = vmatprep.subr.mxu0 %v629
    %850 = vmatpush1.msra.mxu0 %v628
    %851 = vmatprep.subr.mxu0 %v631
    %852 = vmatpush1.msra.mxu0 %v630
    %853 = vmatprep.subr.mxu0 %v633
    %854 = vmatpush1.msra.mxu0 %v632
    %855 = vmatprep.subr.mxu0 %v635
    %856 = vmatpush1.msra.mxu0 %v634
    %857 = vmatprep.subr.mxu0 %v637
    %858 = vmatpush1.msra.mxu0 %v636
    %859 = vmatprep.subr.mxu0 %v639
    %860 = vmatpush1.msra.mxu0 %v638
    %861 = vmatprep.subr.mxu0 %v641
    %862 = vmatpush1.msra.mxu0 %v640
    %863 = vmatprep.subr.mxu0 %v643
    %864 = vmatpush1.msra.mxu0 %v642
    %865 = vmatprep.subr.mxu0 %v645
    %866 = vmatpush1.msra.mxu0 %v644
    %867 = vmatprep.subr.mxu0 %v647
    %868 = vmatpush1.msra.mxu0 %v646
    %869 = vmatprep.subr.mxu0 %v649
    %870 = vmatpush1.msra.mxu0 %v648
    %871 = vmatprep.subr.mxu0 %v651
    %872 = vmatpush1.msra.mxu0 %v650
    %873 = vmatprep.subr.mxu0 %v653
    %874 = vmatpush1.msra.mxu0 %v652
    %875 = vmatprep.subr.mxu0 %v655
    %876 = vmatpush1.msra.mxu0 %v654
    %877 = vmatprep.subr.mxu0 %v657
    %878 = vmatpush1.msra.mxu0 %v656
    %879 = vmatprep.subr.mxu0 %v659
    %880 = vmatpush1.msra.mxu0 %v658
    %881 = vmatprep.subr.mxu0 %v661
    %882 = vmatpush1.msra.mxu0 %v660
    %883 = vmatprep.subr.mxu0 %v663
    %884 = vmatpush1.msra.mxu0 %v662
    %885 = vmatprep.subr.mxu0 %v665
    %886 = vmatpush1.msra.mxu0 %v664
    %887 = vmatprep.subr.mxu0 %v667
    %888 = vmatpush1.msra.mxu0 %v666
    %889 = vmatprep.subr.mxu0 %v669
    %890 = vmatpush1.msra.mxu0 %v668
    %891 = vmatprep.subr.mxu0 %v671
    %892 = vmatpush1.msra.mxu0 %v670
    %893 = vmatprep.subr.mxu0 %v673
    %894 = vmatpush1.msra.mxu0 %v672
    %895 = vmatprep.subr.mxu0 %v675
    %896 = vmatpush1.msra.mxu0 %v674
    %897 = vmatprep.subr.mxu0 %v677
    %898 = vmatpush1.msra.mxu0 %v676
    %899 = vmatprep.subr.mxu0 %v679
    %900 = vmatpush1.msra.mxu0 %v678
    %901 = vmatprep.subr.mxu0 %v681
    %902 = vmatpush1.msra.mxu0 %v680
    %903 = vmatprep.subr.mxu0 %v683
    %904 = vmatpush1.msra.mxu0 %v682
    %905 = vmatprep.subr.mxu0 %v685
    %906 = vmatpush1.msra.mxu0 %v684
    %907 = vmatprep.subr.mxu0 %v687
    %908 = vmatpush1.msra.mxu0 %v686
    %909 = vmatprep.mubr.f32.mxu0 %v523
    %910 = vmatmul.mubr.f32.gmra.mrb[0].mxu0 %v522
    %v911 = vpop.f32.mrb[0].mxu0
    %v912 = vadd.f32 %v799, %v911
    %v913 = vpop.f32.mrb[0].mxu0
    %v914 = vadd.f32 %v801, %v913
    %915 = vmatprep.mubr.f32.mxu0 %v528
    %916 = vmatmul.mubr.f32.gmra.mrb[0].mxu0 %v527
    %v917 = vpop.f32.mrb[0].mxu0
    %v918 = vadd.f32 %v805, %v917
    %v919 = vpop.f32.mrb[0].mxu0
    %v920 = vadd.f32 %v807, %v919
    %921 = vmatprep.mubr.f32.mxu0 %v533
    %922 = vmatmul.mubr.f32.gmra.mrb[0].mxu0 %v532
    %v923 = vpop.f32.mrb[0].mxu0
    %v924 = vadd.f32 %v811, %v923
    %v925 = vpop.f32.mrb[0].mxu0
    %v926 = vadd.f32 %v813, %v925
    %927 = vmatprep.mubr.f32.mxu0 %v538
    %928 = vmatmul.mubr.f32.gmra.mrb[0].mxu0 %v537
    %v929 = vpop.f32.mrb[0].mxu0
    %v930 = vadd.f32 %v817, %v929
    %v931 = vpop.f32.mrb[0].mxu0
    %v932 = vadd.f32 %v819, %v931
    %933 = vmatprep.mubr.f32.mxu0 %v543
    %934 = vmatmul.mubr.f32.gmra.mrb[0].mxu0 %v542
    %v935 = vpop.f32.mrb[0].mxu0
    %v936 = vadd.f32 %v823, %v935
    %v937 = vpop.f32.mrb[0].mxu0
    %v938 = vadd.f32 %v825, %v937
    %939 = vmatprep.mubr.f32.mxu0 %v548
    %940 = vmatmul.mubr.f32.gmra.mrb[0].mxu0 %v547
    %v941 = vpop.f32.mrb[0].mxu0
    %v942 = vadd.f32 %v829, %v941
    %v943 = vpop.f32.mrb[0].mxu0
    %v944 = vadd.f32 %v831, %v943
    %945 = vmatprep.mubr.f32.mxu0 %v553
    %946 = vmatmul.mubr.f32.gmra.mrb[0].mxu0 %v552
    %v947 = vpop.f32.mrb[0].mxu0
    %v948 = vadd.f32 %v835, %v947
    %v949 = vpop.f32.mrb[0].mxu0
    %v950 = vadd.f32 %v837, %v949
    %951 = vmatprep.mubr.f32.mxu0 %v558
    %952 = vmatmul.mubr.f32.gmra.mrb[0].mxu0 %v557
    %v953 = vpop.f32.mrb[0].mxu0
    %v954 = vadd.f32 %v841, %v953
    %v955 = vpop.f32.mrb[0].mxu0
    %v956 = vadd.f32 %v843, %v955
    %957 = vdwg.mxu0
    %958 = vmatprep.subr.mxu0 %v689
    %959 = vmatpush1.msra.mxu0 %v688
    %960 = vmatprep.subr.mxu0 %v691
    %961 = vmatpush1.msra.mxu0 %v690
    %962 = vmatprep.subr.mxu0 %v693
    %963 = vmatpush1.msra.mxu0 %v692
    %964 = vmatprep.subr.mxu0 %v695
    %965 = vmatpush1.msra.mxu0 %v694
    %966 = vmatprep.subr.mxu0 %v697
    %967 = vmatpush1.msra.mxu0 %v696
    %968 = vmatprep.subr.mxu0 %v699
    %969 = vmatpush1.msra.mxu0 %v698
    %970 = vmatprep.subr.mxu0 %v701
    %971 = vmatpush1.msra.mxu0 %v700
    %972 = vmatprep.subr.mxu0 %v703
    %973 = vmatpush1.msra.mxu0 %v702
    %974 = vmatprep.subr.mxu0 %v705
    %975 = vmatpush1.msra.mxu0 %v704
    %976 = vmatprep.subr.mxu0 %v707
    %977 = vmatpush1.msra.mxu0 %v706
    %978 = vmatprep.subr.mxu0 %v709
    %979 = vmatpush1.msra.mxu0 %v708
    %980 = vmatprep.subr.mxu0 %v711
    %981 = vmatpush1.msra.mxu0 %v710
    %982 = vmatprep.subr.mxu0 %v713
    %983 = vmatpush1.msra.mxu0 %v712
    %984 = vmatprep.subr.mxu0 %v715
    %985 = vmatpush1.msra.mxu0 %v714
    %986 = vmatprep.subr.mxu0 %v717
    %987 = vmatpush1.msra.mxu0 %v716
    %988 = vmatprep.subr.mxu0 %v719
    %989 = vmatpush1.msra.mxu0 %v718
    %990 = vmatprep.subr.mxu0 0.0
    %991 = vmatpush1.msra.mxu0 0.0
    %992 = vmatprep.subr.mxu0 0.0
    %993 = vmatpush1.msra.mxu0 0.0
    %994 = vmatprep.subr.mxu0 0.0
    %995 = vmatpush1.msra.mxu0 0.0
    %996 = vmatprep.subr.mxu0 0.0
    %997 = vmatpush1.msra.mxu0 0.0
    %998 = vmatprep.subr.mxu0 0.0
    %999 = vmatpush1.msra.mxu0 0.0
    %1000 = vmatprep.subr.mxu0 0.0
    %1001 = vmatpush1.msra.mxu0 0.0
    %1002 = vmatprep.subr.mxu0 0.0
    %1003 = vmatpush1.msra.mxu0 0.0
    %1004 = vmatprep.subr.mxu0 0.0
    %1005 = vmatpush1.msra.mxu0 0.0
    %1006 = vmatprep.subr.mxu0 0.0
    %1007 = vmatpush1.msra.mxu0 0.0
    %1008 = vmatprep.subr.mxu0 0.0
    %1009 = vmatpush1.msra.mxu0 0.0
    %1010 = vmatprep.subr.mxu0 0.0
    %1011 = vmatpush1.msra.mxu0 0.0
    %1012 = vmatprep.subr.mxu0 0.0
    %1013 = vmatpush1.msra.mxu0 0.0
    %1014 = vmatprep.subr.mxu0 0.0
    %1015 = vmatpush1.msra.mxu0 0.0
    %1016 = vmatprep.subr.mxu0 0.0
    %1017 = vmatpush1.msra.mxu0 0.0
    %1018 = vmatprep.subr.mxu0 0.0
    %1019 = vmatpush1.msra.mxu0 0.0
    %1020 = vmatprep.subr.mxu0 0.0
    %1021 = vmatpush1.msra.mxu0 0.0
    %1022 = vmatprep.mubr.f32.mxu0 0.0
    %1023 = vmatmul.mubr.f32.gmra.mrb[0].mxu0 %v524
    %v1024 = vpop.f32.mrb[0].mxu0
    %v1025 = vadd.f32 %v912, %v1024
    %v1026 = vpop.f32.mrb[0].mxu0
    %v1027 = vadd.f32 %v914, %v1026
    %1028 = vmatprep.mubr.f32.mxu0 0.0
    %1029 = vmatmul.mubr.f32.gmra.mrb[0].mxu0 %v529
    %v1030 = vpop.f32.mrb[0].mxu0
    %v1031 = vadd.f32 %v918, %v1030
    %v1032 = vpop.f32.mrb[0].mxu0
    %v1033 = vadd.f32 %v920, %v1032
    %1034 = vmatprep.mubr.f32.mxu0 0.0
    %1035 = vmatmul.mubr.f32.gmra.mrb[0].mxu0 %v534
    %v1036 = vpop.f32.mrb[0].mxu0
    %v1037 = vadd.f32 %v924, %v1036
    %v1038 = vpop.f32.mrb[0].mxu0
    %v1039 = vadd.f32 %v926, %v1038
    %1040 = vmatprep.mubr.f32.mxu0 0.0
    %1041 = vmatmul.mubr.f32.gmra.mrb[0].mxu0 %v539
    %v1042 = vpop.f32.mrb[0].mxu0
    %v1043 = vadd.f32 %v930, %v1042
    %v1044 = vpop.f32.mrb[0].mxu0
    %v1045 = vadd.f32 %v932, %v1044
    %1046 = vmatprep.mubr.f32.mxu0 0.0
    %1047 = vmatmul.mubr.f32.gmra.mrb[0].mxu0 %v544
    %v1048 = vpop.f32.mrb[0].mxu0
    %v1049 = vadd.f32 %v936, %v1048
    %v1050 = vpop.f32.mrb[0].mxu0
    %v1051 = vadd.f32 %v938, %v1050
    %1052 = vmatprep.mubr.f32.mxu0 0.0
    %1053 = vmatmul.mubr.f32.gmra.mrb[0].mxu0 %v549
    %v1054 = vpop.f32.mrb[0].mxu0
    %v1055 = vadd.f32 %v942, %v1054
    %v1056 = vpop.f32.mrb[0].mxu0
    %v1057 = vadd.f32 %v944, %v1056
    %1058 = vmatprep.mubr.f32.mxu0 0.0
    %1059 = vmatmul.mubr.f32.gmra.mrb[0].mxu0 %v554
    %v1060 = vpop.f32.mrb[0].mxu0
    %v1061 = vadd.f32 %v948, %v1060
    %v1062 = vpop.f32.mrb[0].mxu0
    %v1063 = vadd.f32 %v950, %v1062
    %1064 = vmatprep.mubr.f32.mxu0 0.0
    %1065 = vmatmul.mubr.f32.gmra.mrb[0].mxu0 %v559
    %v1066 = vpop.f32.mrb[0].mxu0
    %v1067 = vadd.f32 %v954, %v1066
    %v1068 = vpop.f32.mrb[0].mxu0
    %v1069 = vadd.f32 %v956, %v1068
    %1070 = vdwg.mxu0
    %v1071 = vmax.f32 %v1025, %v1027
    %v1072 = vmax.f32 %v1031, %v1033
    %v1073 = vmax.f32 %v1037, %v1039
    %v1074 = vmax.f32 %v1043, %v1045
    %v1075 = vmax.f32 %v1049, %v1051
    %v1076 = vmax.f32 %v1055, %v1057
    %v1077 = vmax.f32 %v1061, %v1063
    %v1078 = vmax.f32 %v1067, %v1069
    %v1079 = vmax.f32 %v1071, %v1072
    %v1080 = vmax.f32 %v1073, %v1074
    %v1081 = vmax.f32 %v1075, %v1076
    %v1082 = vmax.f32 %v1077, %v1078
    %v1083 = vmax.f32 %v1079, 0.0
    %v1084 = vmax.f32 %v1080, 0.0
    %v1085 = vmax.f32 %v1081, 0.0
    %v1086 = vmax.f32 %v1082, 0.0
    %1087 = vst [vmem:[#allocation3] sm:$0xff] %v1083
    %1088 = vst [vmem:[#allocation3 + $0x8] sm:$0xff] %v1084
    %1089 = vst [vmem:[#allocation3 + $0x10] sm:$0xff] %v1085
    %1090 = vst [vmem:[#allocation3 + $0x18] sm:$0xff] %v1086
    %v1091 = vld [vmem:[#allocation3] sm:$0xff]
    %v1092 = vld [vmem:[#allocation3 + $0x8] sm:$0xff]
    %v1093 = vld [vmem:[#allocation3 + $0x10] sm:$0xff]
    %v1094 = vld [vmem:[#allocation3 + $0x18] sm:$0xff]
    %v1095 = vld [vmem:[%s5] sm:$0xff]
    %v1096 = vld [vmem:[%s5 + $0x8] sm:$0xff]
    %v1097 = vld [vmem:[%s5 + $0x10] sm:$0xff]
    %v1098 = vld [vmem:[%s5 + $0x18] sm:$0xff]
    %v1099 = vld [vmem:[%s5 + $0x20] sm:$0xff]
    %v1100 = vld [vmem:[%s5 + $0x28] sm:$0xff]
    %v1101 = vld [vmem:[%s5 + $0x30] sm:$0xff]
    %v1102 = vld [vmem:[%s5 + $0x38] sm:$0xff]
    %v1103 = vld [vmem:[%s5 + $0x40] sm:$0xff]
    %v1104 = vld [vmem:[%s5 + $0x48] sm:$0xff]
    %v1105 = vld [vmem:[%s5 + $0x50] sm:$0xff]
    %v1106 = vld [vmem:[%s5 + $0x58] sm:$0xff]
    %v1107 = vld [vmem:[%s5 + $0x60] sm:$0xff]
    %v1108 = vld [vmem:[%s5 + $0x68] sm:$0xff]
    %v1109 = vld [vmem:[%s5 + $0x70] sm:$0xff]
    %v1110 = vld [vmem:[%s5 + $0x78] sm:$0xff]
    %v1111 = vld [vmem:[%s5 + $0x80] sm:$0xff]
    %v1112 = vld [vmem:[%s5 + $0x88] sm:$0xff]
    %v1113 = vld [vmem:[%s5 + $0x90] sm:$0xff]
    %v1114 = vld [vmem:[%s5 + $0x98] sm:$0xff]
    %v1115 = vld [vmem:[%s5 + $0xa0] sm:$0xff]
    %v1116 = vld [vmem:[%s5 + $0xa8] sm:$0xff]
    %v1117 = vld [vmem:[%s5 + $0xb0] sm:$0xff]
    %v1118 = vld [vmem:[%s5 + $0xb8] sm:$0xff]
    %v1119 = vld [vmem:[%s5 + $0xc0] sm:$0xff]
    %v1120 = vld [vmem:[%s5 + $0xc8] sm:$0xff]
    %v1121 = vld [vmem:[%s5 + $0xd0] sm:$0xff]
    %v1122 = vld [vmem:[%s5 + $0xd8] sm:$0xff]
    %v1123 = vld [vmem:[%s5 + $0xe0] sm:$0xff]
    %v1124 = vld [vmem:[%s5 + $0xe8] sm:$0xff]
    %v1125 = vld [vmem:[%s5 + $0xf0] sm:$0xff]
    %v1126 = vld [vmem:[%s5 + $0xf8] sm:$0xff]
    %v1127 = vld [vmem:[%s5 + $0x100] sm:$0xff]
    %v1128 = vld [vmem:[%s5 + $0x108] sm:$0xff]
    %v1129 = vld [vmem:[%s5 + $0x110] sm:$0xff]
    %v1130 = vld [vmem:[%s5 + $0x118] sm:$0xff]
    %v1131 = vld [vmem:[%s5 + $0x120] sm:$0xff]
    %v1132 = vld [vmem:[%s5 + $0x128] sm:$0xff]
    %v1133 = vld [vmem:[%s5 + $0x130] sm:$0xff]
    %v1134 = vld [vmem:[%s5 + $0x138] sm:$0xff]
    %v1135 = vld [vmem:[%s5 + $0x140] sm:$0xff]
    %v1136 = vld [vmem:[%s5 + $0x148] sm:$0xff]
    %v1137 = vld [vmem:[%s5 + $0x150] sm:$0xff]
    %v1138 = vld [vmem:[%s5 + $0x158] sm:$0xff]
    %v1139 = vld [vmem:[%s5 + $0x160] sm:$0xff]
    %v1140 = vld [vmem:[%s5 + $0x168] sm:$0xff]
    %v1141 = vld [vmem:[%s5 + $0x170] sm:$0xff]
    %v1142 = vld [vmem:[%s5 + $0x178] sm:$0xff]
    %v1143 = vld [vmem:[%s5 + $0x180] sm:$0xff]
    %v1144 = vld [vmem:[%s5 + $0x188] sm:$0xff]
    %v1145 = vld [vmem:[%s5 + $0x190] sm:$0xff]
    %v1146 = vld [vmem:[%s5 + $0x198] sm:$0xff]
    %v1147 = vld [vmem:[%s5 + $0x1a0] sm:$0xff]
    %v1148 = vld [vmem:[%s5 + $0x1a8] sm:$0xff]
    %v1149 = vld [vmem:[%s5 + $0x1b0] sm:$0xff]
    %v1150 = vld [vmem:[%s5 + $0x1b8] sm:$0xff]
    %v1151 = vld [vmem:[%s5 + $0x1c0] sm:$0xff]
    %v1152 = vld [vmem:[%s5 + $0x1c8] sm:$0xff]
    %v1153 = vld [vmem:[%s5 + $0x1d0] sm:$0xff]
    %v1154 = vld [vmem:[%s5 + $0x1d8] sm:$0xff]
    %v1155 = vld [vmem:[%s5 + $0x1e0] sm:$0xff]
    %v1156 = vld [vmem:[%s5 + $0x1e8] sm:$0xff]
    %v1157 = vld [vmem:[%s5 + $0x1f0] sm:$0xff]
    %v1158 = vld [vmem:[%s5 + $0x1f8] sm:$0xff]
    %v1159 = vld [vmem:[%s6] sm:$0x1]
    %v1161 = vlaneseq
    %v1162 = vshrl.u32 %v1161, 7
    %v1163 = vsub.s32 0, %v1162
    %v1164 = vrot.slane %v1159, %v1163
    %1166 = vmatprep.subr.mxu0 0.0
    %1167 = vmatpush1.msra.mxu0 %v1095
    %1168 = vmatprep.subr.mxu0 0.0
    %1169 = vmatpush1.msra.mxu0 %v1096
    %1170 = vmatprep.subr.mxu0 0.0
    %1171 = vmatpush1.msra.mxu0 %v1097
    %1172 = vmatprep.subr.mxu0 0.0
    %1173 = vmatpush1.msra.mxu0 %v1098
    %1174 = vmatprep.subr.mxu0 0.0
    %1175 = vmatpush1.msra.mxu0 %v1099
    %1176 = vmatprep.subr.mxu0 0.0
    %1177 = vmatpush1.msra.mxu0 %v1100
    %1178 = vmatprep.subr.mxu0 0.0
    %1179 = vmatpush1.msra.mxu0 %v1101
    %1180 = vmatprep.subr.mxu0 0.0
    %1181 = vmatpush1.msra.mxu0 %v1102
    %1182 = vmatprep.subr.mxu0 0.0
    %1183 = vmatpush1.msra.mxu0 %v1103
    %1184 = vmatprep.subr.mxu0 0.0
    %1185 = vmatpush1.msra.mxu0 %v1104
    %1186 = vmatprep.subr.mxu0 0.0
    %1187 = vmatpush1.msra.mxu0 %v1105
    %1188 = vmatprep.subr.mxu0 0.0
    %1189 = vmatpush1.msra.mxu0 %v1106
    %1190 = vmatprep.subr.mxu0 0.0
    %1191 = vmatpush1.msra.mxu0 %v1107
    %1192 = vmatprep.subr.mxu0 0.0
    %1193 = vmatpush1.msra.mxu0 %v1108
    %1194 = vmatprep.subr.mxu0 0.0
    %1195 = vmatpush1.msra.mxu0 %v1109
    %1196 = vmatprep.subr.mxu0 0.0
    %1197 = vmatpush1.msra.mxu0 %v1110
    %1198 = vmatprep.subr.mxu0 0.0
    %1199 = vmatpush1.msra.mxu0 %v1111
    %1200 = vmatprep.subr.mxu0 0.0
    %1201 = vmatpush1.msra.mxu0 %v1112
    %1202 = vmatprep.subr.mxu0 0.0
    %1203 = vmatpush1.msra.mxu0 %v1113
    %1204 = vmatprep.subr.mxu0 0.0
    %1205 = vmatpush1.msra.mxu0 %v1114
    %1206 = vmatprep.subr.mxu0 0.0
    %1207 = vmatpush1.msra.mxu0 %v1115
    %1208 = vmatprep.subr.mxu0 0.0
    %1209 = vmatpush1.msra.mxu0 %v1116
    %1210 = vmatprep.subr.mxu0 0.0
    %1211 = vmatpush1.msra.mxu0 %v1117
    %1212 = vmatprep.subr.mxu0 0.0
    %1213 = vmatpush1.msra.mxu0 %v1118
    %1214 = vmatprep.subr.mxu0 0.0
    %1215 = vmatpush1.msra.mxu0 %v1119
    %1216 = vmatprep.subr.mxu0 0.0
    %1217 = vmatpush1.msra.mxu0 %v1120
    %1218 = vmatprep.subr.mxu0 0.0
    %1219 = vmatpush1.msra.mxu0 %v1121
    %1220 = vmatprep.subr.mxu0 0.0
    %1221 = vmatpush1.msra.mxu0 %v1122
    %1222 = vmatprep.subr.mxu0 0.0
    %1223 = vmatpush1.msra.mxu0 %v1123
    %1224 = vmatprep.subr.mxu0 0.0
    %1225 = vmatpush1.msra.mxu0 %v1124
    %1226 = vmatprep.subr.mxu0 0.0
    %1227 = vmatpush1.msra.mxu0 %v1125
    %1228 = vmatprep.subr.mxu0 0.0
    %1229 = vmatpush1.msra.mxu0 %v1126
    %1230 = vmatprep.mubr.f32.mxu0 %v1092
    %1231 = vmatmul.mubr.f32.gmra.mrb[0].mxu0 %v1091
    %v1232 = vpop.f32.mrb[0].mxu0
    %v1233 = vadd.f32 %v1164, %v1232
    %v1234 = vpop.f32.mrb[0].mxu0
    %1235 = vdwg.mxu0
    %1236 = vmatprep.subr.mxu0 0.0
    %1237 = vmatpush1.msra.mxu0 %v1127
    %1238 = vmatprep.subr.mxu0 0.0
    %1239 = vmatpush1.msra.mxu0 %v1128
    %1240 = vmatprep.subr.mxu0 0.0
    %1241 = vmatpush1.msra.mxu0 %v1129
    %1242 = vmatprep.subr.mxu0 0.0
    %1243 = vmatpush1.msra.mxu0 %v1130
    %1244 = vmatprep.subr.mxu0 0.0
    %1245 = vmatpush1.msra.mxu0 %v1131
    %1246 = vmatprep.subr.mxu0 0.0
    %1247 = vmatpush1.msra.mxu0 %v1132
    %1248 = vmatprep.subr.mxu0 0.0
    %1249 = vmatpush1.msra.mxu0 %v1133
    %1250 = vmatprep.subr.mxu0 0.0
    %1251 = vmatpush1.msra.mxu0 %v1134
    %1252 = vmatprep.subr.mxu0 0.0
    %1253 = vmatpush1.msra.mxu0 %v1135
    %1254 = vmatprep.subr.mxu0 0.0
    %1255 = vmatpush1.msra.mxu0 %v1136
    %1256 = vmatprep.subr.mxu0 0.0
    %1257 = vmatpush1.msra.mxu0 %v1137
    %1258 = vmatprep.subr.mxu0 0.0
    %1259 = vmatpush1.msra.mxu0 %v1138
    %1260 = vmatprep.subr.mxu0 0.0
    %1261 = vmatpush1.msra.mxu0 %v1139
    %1262 = vmatprep.subr.mxu0 0.0
    %1263 = vmatpush1.msra.mxu0 %v1140
    %1264 = vmatprep.subr.mxu0 0.0
    %1265 = vmatpush1.msra.mxu0 %v1141
    %1266 = vmatprep.subr.mxu0 0.0
    %1267 = vmatpush1.msra.mxu0 %v1142
    %1268 = vmatprep.subr.mxu0 0.0
    %1269 = vmatpush1.msra.mxu0 %v1143
    %1270 = vmatprep.subr.mxu0 0.0
    %1271 = vmatpush1.msra.mxu0 %v1144
    %1272 = vmatprep.subr.mxu0 0.0
    %1273 = vmatpush1.msra.mxu0 %v1145
    %1274 = vmatprep.subr.mxu0 0.0
    %1275 = vmatpush1.msra.mxu0 %v1146
    %1276 = vmatprep.subr.mxu0 0.0
    %1277 = vmatpush1.msra.mxu0 %v1147
    %1278 = vmatprep.subr.mxu0 0.0
    %1279 = vmatpush1.msra.mxu0 %v1148
    %1280 = vmatprep.subr.mxu0 0.0
    %1281 = vmatpush1.msra.mxu0 %v1149
    %1282 = vmatprep.subr.mxu0 0.0
    %1283 = vmatpush1.msra.mxu0 %v1150
    %1284 = vmatprep.subr.mxu0 0.0
    %1285 = vmatpush1.msra.mxu0 %v1151
    %1286 = vmatprep.subr.mxu0 0.0
    %1287 = vmatpush1.msra.mxu0 %v1152
    %1288 = vmatprep.subr.mxu0 0.0
    %1289 = vmatpush1.msra.mxu0 %v1153
    %1290 = vmatprep.subr.mxu0 0.0
    %1291 = vmatpush1.msra.mxu0 %v1154
    %1292 = vmatprep.subr.mxu0 0.0
    %1293 = vmatpush1.msra.mxu0 %v1155
    %1294 = vmatprep.subr.mxu0 0.0
    %1295 = vmatpush1.msra.mxu0 %v1156
    %1296 = vmatprep.subr.mxu0 0.0
    %1297 = vmatpush1.msra.mxu0 %v1157
    %1298 = vmatprep.subr.mxu0 0.0
    %1299 = vmatpush1.msra.mxu0 %v1158
    %1300 = vmatprep.mubr.f32.mxu0 %v1094
    %1301 = vmatmul.mubr.f32.gmra.mrb[0].mxu0 %v1093
    %v1302 = vpop.f32.mrb[0].mxu0
    %v1303 = vadd.f32 %v1233, %v1302
    %v1304 = vpop.f32.mrb[0].mxu0
    %1305 = vdwg.mxu0
    %v1306 = vmax.f32 %v1303, 0.0
    %v1307 = vld [vmem:[%s7] sm:$0xff]
    %v1308 = vld [vmem:[%s7 + $0x8] sm:$0xff]
    %v1309 = vld [vmem:[%s7 + $0x10] sm:$0xff]
    %v1310 = vld [vmem:[%s7 + $0x18] sm:$0xff]
    %v1311 = vld [vmem:[%s7 + $0x20] sm:$0xff]
    %v1312 = vld [vmem:[%s7 + $0x28] sm:$0xff]
    %v1313 = vld [vmem:[%s7 + $0x30] sm:$0x3]
    %v1314 = vld [vmem:[%s8] sm:$0x1]
    %v1316 = vlaneseq
    %v1317 = vshrl.u32 %v1316, 7
    %v1318 = vsub.s32 0, %v1317
    %v1319 = vrot.slane %v1314, %v1318
    %vm1321 = vcmask 408576
    %v1323 = vsel %vm1321, %v1306, 0
    %vm1325 = vcmask 1041408
    %v1327 = vsel %vm1325, %v1313, 0
    %1329 = vmatprep.subr.mxu0 0.0
    %1330 = vmatpush1.msra.mxu0 %v1307
    %1331 = vmatprep.subr.mxu0 0.0
    %1332 = vmatpush1.msra.mxu0 %v1308
    %1333 = vmatprep.subr.mxu0 0.0
    %1334 = vmatpush1.msra.mxu0 %v1309
    %1335 = vmatprep.subr.mxu0 0.0
    %1336 = vmatpush1.msra.mxu0 %v1310
    %1337 = vmatprep.subr.mxu0 0.0
    %1338 = vmatpush1.msra.mxu0 %v1311
    %1339 = vmatprep.subr.mxu0 0.0
    %1340 = vmatpush1.msra.mxu0 %v1312
    %1341 = vmatprep.subr.mxu0 0.0
    %1342 = vmatpush1.msra.mxu0 %v1327
    %1343 = vmatprep.subr.mxu0 0.0
    %1344 = vmatpush1.msra.mxu0 0.0
    %1345 = vmatprep.subr.mxu0 0.0
    %1346 = vmatpush1.msra.mxu0 0.0
    %1347 = vmatprep.subr.mxu0 0.0
    %1348 = vmatpush1.msra.mxu0 0.0
    %1349 = vmatprep.subr.mxu0 0.0
    %1350 = vmatpush1.msra.mxu0 0.0
    %1351 = vmatprep.subr.mxu0 0.0
    %1352 = vmatpush1.msra.mxu0 0.0
    %1353 = vmatprep.subr.mxu0 0.0
    %1354 = vmatpush1.msra.mxu0 0.0
    %1355 = vmatprep.subr.mxu0 0.0
    %1356 = vmatpush1.msra.mxu0 0.0
    %1357 = vmatprep.subr.mxu0 0.0
    %1358 = vmatpush1.msra.mxu0 0.0
    %1359 = vmatprep.subr.mxu0 0.0
    %1360 = vmatpush1.msra.mxu0 0.0
    %1361 = vmatprep.subr.mxu0 0.0
    %1362 = vmatpush1.msra.mxu0 0.0
    %1363 = vmatprep.subr.mxu0 0.0
    %1364 = vmatpush1.msra.mxu0 0.0
    %1365 = vmatprep.subr.mxu0 0.0
    %1366 = vmatpush1.msra.mxu0 0.0
    %1367 = vmatprep.subr.mxu0 0.0
    %1368 = vmatpush1.msra.mxu0 0.0
    %1369 = vmatprep.subr.mxu0 0.0
    %1370 = vmatpush1.msra.mxu0 0.0
    %1371 = vmatprep.subr.mxu0 0.0
    %1372 = vmatpush1.msra.mxu0 0.0
    %1373 = vmatprep.subr.mxu0 0.0
    %1374 = vmatpush1.msra.mxu0 0.0
    %1375 = vmatprep.subr.mxu0 0.0
    %1376 = vmatpush1.msra.mxu0 0.0
    %1377 = vmatprep.subr.mxu0 0.0
    %1378 = vmatpush1.msra.mxu0 0.0
    %1379 = vmatprep.subr.mxu0 0.0
    %1380 = vmatpush1.msra.mxu0 0.0
    %1381 = vmatprep.subr.mxu0 0.0
    %1382 = vmatpush1.msra.mxu0 0.0
    %1383 = vmatprep.subr.mxu0 0.0
    %1384 = vmatpush1.msra.mxu0 0.0
    %1385 = vmatprep.subr.mxu0 0.0
    %1386 = vmatpush1.msra.mxu0 0.0
    %1387 = vmatprep.subr.mxu0 0.0
    %1388 = vmatpush1.msra.mxu0 0.0
    %1389 = vmatprep.subr.mxu0 0.0
    %1390 = vmatpush1.msra.mxu0 0.0
    %1391 = vmatprep.subr.mxu0 0.0
    %1392 = vmatpush1.msra.mxu0 0.0
    %1393 = vmatprep.mubr.f32.mxu0 0.0
    %1394 = vmatmul.mubr.f32.gmra.mrb[0].mxu0 %v1323
    %v1395 = vpop.f32.mrb[0].mxu0
    %v1396 = vadd.f32 %v1319, %v1395
    %v1397 = vpop.f32.mrb[0].mxu0
    %1398 = vdwg.mxu0
    %vm1399 = vcmask 80896
    %v1400 = vsel %vm1399, %v1396, -inf
    %1401 = vmax.xlane.f32.xlu0 %v1400
    %v1402 = vpop.xlane.xlu0 %1401
    %v1403 = vsub.f32 %v1396, %v1402
    %v1404 = vmul.f32 %v1403, 1.442695
    %v1405 = vpow.pop %v1404
    %v1406 = vsel %vm1399, %v1405, 0.0
    %1407 = vadd.xlane.f32.xlu0 %v1406
    %v1408 = vpop.xlane.xlu0 %1407
    %v1409 = vlog2.pop %v1408
    %v1410 = vmul.f32 %v1409, 0.6931472
    %v1411 = vadd.f32 %v1402, %v1410
    %v1412 = vsub.f32 %v1396, %v1411
    %1413 = vst.msk [vmem:[#allocation7] sm:$0xff] %vm1399, %v1412
    // Predicated region
    $region42: #{tpu_custom_call.1} parent=1 // pred_check
      _
    $region43: #{tpu_custom_call.1} parent=1 // pred_check_branch
      %1415 = sbr.rel (0) target = $region45
    $region44: #{tpu_custom_call.1} parent=1 // pred_region
      %s1417 = ssub.s32 128, 128
      %1418 = vsyncadd [#allocation6], %s1417
      %s1420 = sshll.u32 [#allocation7], 4
      %s1421 = int_to_ptr.vmem [resolvable:$true] %s1420
      %1423 = dma.vmem_to_hbm [thread:$0]  %s1421, 128, %s9, [#allocation6]
    $region45: #{tpu_custom_call.1} parent=1 // pred_fallthru
      _
    // Predicated region
    $region46: #{tpu_custom_call.1} parent=1 // pred_check
      _
    $region47: #{tpu_custom_call.1} parent=1 // pred_check_branch
      %1425 = sbr.rel (0) target = $region49
    $region48: #{tpu_custom_call.1} parent=1 // pred_region
      %1426 = dma.done [#allocation6], 128
    $region49: #{tpu_custom_call.1} parent=1 // pred_fallthru
      _
    %1427 = vsyncpa [#allocation5], 1
    %1428 = vsyncpa [#allocation6], 1

</llo_original>
